<compile_context>
chip_gen: v7x
topology: tpu7x:2x2x1
jax: 0.10.0
libtpu: 0.0.40
codegen_flags: <defaults>
</compile_context>

<pallas_src>
import functools

import jax
import jax.numpy as jnp
from jax.experimental import pallas as pl
from jax.experimental.pallas import tpu as pltpu


def _round_up(n, m):
    return ((n + m - 1) // m) * m


_NEG_BIG = -1.0e30  # decode-bias pad value -> softmax pad columns exp() underflow to 0


def _vmem_capacity_bytes():
    """Per-core VMEM capacity; conservative 64 MiB (v7x) fallback if the query fails."""
    try:
        info = pltpu.get_tpu_info()
        cap = getattr(info, "vmem_capacity_bytes", None)
        if cap:
            return int(cap)
    except Exception:
        pass
    return 64 << 20


def gsm_kernel(
    # inputs
    x_ref, eps_ref,
    w1s_ref, b1s_ref,          # fused [fc11 | fcs] : [V, 2Hp], [1, 2Hp] (zero bias in fcs half)
    w12_ref, b12_ref,          # fc12               : [Hp, Hp], [1, Hp]
    w2_ref, b2_ref,            # fused [fc21 | fc22]: [Hp, 2Kp], [1, 2Kp]
    wg1_ref, bg1_ref, wg2_ref, bg2_ref,
    wg3_ref, bg3_ref, wg4_ref, bg4_ref,
    wd1_ref, bd1_ref,          # fcd1               : [Kp, Vp], [1, Vp] (pad cols = -1e30)
    # outputs
    packed_ref, theta_ref,
    *, Hp, Kp, mxu_dtype,
):
    x = x_ref[...]                                              # (TB, V) in mxu_dtype

    # ---- encode: one MXU pass over the V reduction for fc11 and fcs ----
    e = jnp.dot(x, w1s_ref[...], preferred_element_type=jnp.float32) + b1s_ref[...]
    h = jnp.maximum(e[:, :Hp], 0.0)                             # relu(fc11(x))   (tile-aligned slice)
    skip = e[:, Hp:]                                            # fcs(x)          (tile-aligned slice)
    h = jnp.dot(h.astype(mxu_dtype), w12_ref[...],
                preferred_element_type=jnp.float32) + b12_ref[...]
    e1 = jnp.maximum(h, 0.0) + skip                             # relu(fc12(.)) + skip

    # fused fc21 | fc22 -> [mu | logvar] in a single dot
    ml = jnp.dot(e1.astype(mxu_dtype), w2_ref[...],
                 preferred_element_type=jnp.float32) + b2_ref[...]
    mu = ml[:, :Kp]
    logvar = ml[:, Kp:]

    # ---- reparameterize (training mode, eps supplied by wrapper) ----
    std = jnp.exp(0.5 * logvar)
    z = eps_ref[...] * std + mu

    # ---- generate ----
    g1 = jnp.tanh(jnp.dot(z.astype(mxu_dtype), wg1_ref[...],
                          preferred_element_type=jnp.float32) + bg1_ref[...])
    g1 = jnp.tanh(jnp.dot(g1.astype(mxu_dtype), wg2_ref[...],
                          preferred_element_type=jnp.float32) + bg2_ref[...])
    g1 = jnp.tanh(jnp.dot(g1.astype(mxu_dtype), wg3_ref[...],
                          preferred_element_type=jnp.float32) + bg3_ref[...])
    g1 = jnp.tanh(jnp.dot(g1.astype(mxu_dtype), wg4_ref[...],
                          preferred_element_type=jnp.float32) + bg4_ref[...])
    g = g1 + z

    # ---- decode: numerically stable softmax over the padded (lane-dense) vocab dim ----
    logits = jnp.dot(g.astype(mxu_dtype), wd1_ref[...],
                     preferred_element_type=jnp.float32) + bd1_ref[...]
    m = jnp.max(logits, axis=-1, keepdims=True)
    p = jnp.exp(logits - m)                                     # pad columns underflow to 0
    s = jnp.sum(p, axis=-1, keepdims=True)
    r = pl.reciprocal(s, approx=True)
    r = r * (2.0 - s * r)                                       # one Newton step -> ~exact
    theta_ref[...] = p * r

    # ---- packed slab [mu | logvar | z | g]: every piece at a 128-aligned offset ----
    packed_ref[:, 0:2 * Kp] = ml
    packed_ref[:, 2 * Kp:3 * Kp] = z
    packed_ref[:, 3 * Kp:4 * Kp] = g


def pack_params(p, mxu_dtype=jnp.bfloat16):
    """Fuse shared-input weights, pad every lane dim to 128, cast MXU operands to bf16."""
    # TODO(synk): on v7x, quantize w1s/wd1 (the V-sized weights) to fp8 with per-column scales.
    f32 = jnp.float32
    V, H = p["w11"].shape
    K = p["w21"].shape[1]
    Hp, Kp, Vp = _round_up(H, 128), _round_up(K, 128), _round_up(V, 128)

    def pw(w, rows, cols):
        w = w.astype(f32)
        return jnp.pad(w, ((0, rows - w.shape[0]), (0, cols - w.shape[1])))

    def pb(b, cols, fill=0.0):
        b = b.astype(f32)
        return jnp.pad(b, ((0, 0), (0, cols - b.shape[1])), constant_values=fill)

    return {
        "w1s": jnp.concatenate([pw(p["w11"], V, Hp), pw(p["ws"], V, Hp)], axis=1).astype(mxu_dtype),
        "b1s": jnp.concatenate([pb(p["b11"], Hp), jnp.zeros((1, Hp), f32)], axis=1),
        "w12": pw(p["w12"], Hp, Hp).astype(mxu_dtype), "b12": pb(p["b12"], Hp),
        "w2":  jnp.concatenate([pw(p["w21"], Hp, Kp), pw(p["w22"], Hp, Kp)], axis=1).astype(mxu_dtype),
        "b2":  jnp.concatenate([pb(p["b21"], Kp), pb(p["b22"], Kp)], axis=1),
        "wg1": pw(p["wg1"], Kp, Kp).astype(mxu_dtype), "bg1": pb(p["bg1"], Kp),
        "wg2": pw(p["wg2"], Kp, Kp).astype(mxu_dtype), "bg2": pb(p["bg2"], Kp),
        "wg3": pw(p["wg3"], Kp, Kp).astype(mxu_dtype), "bg3": pb(p["bg3"], Kp),
        "wg4": pw(p["wg4"], Kp, Kp).astype(mxu_dtype), "bg4": pb(p["bg4"], Kp),
        "wd1": pw(p["wd1"], Kp, Vp).astype(mxu_dtype),
        "bd1": pb(p["bd1"], Vp, fill=_NEG_BIG),
    }


def _resident_spec(shape, single_buffer):
    """Weight stays in VMEM across grid steps; single-buffered when supported."""
    if single_buffer and hasattr(pl, "Buffered"):
        try:
            return pl.BlockSpec(shape, lambda i: (0, 0), pipeline_mode=pl.Buffered(1))
        except TypeError:
            pass
    return pl.BlockSpec(shape, lambda i: (0, 0))


@functools.partial(jax.jit, static_argnames=("single_buffer_weights",))
def _gsm_forward_impl(x, eps, pp, *, single_buffer_weights):
    """x: (B, input_dim) f32, eps: (B, topic_num) f32, pp: pack_params(...) output."""
    B, V = x.shape
    K = eps.shape[1]
    Hp = pp["w12"].shape[0]
    Kp = pp["wg1"].shape[0]
    Vp = pp["wd1"].shape[1]
    Wp = 4 * Kp
    mxu_dtype = pp["w1s"].dtype

    # ---- generation-aware VMEM budget ----
    def _nbytes(a):
        return a.size * a.dtype.itemsize

    weight_bytes = sum(_nbytes(v) for v in pp.values())
    weight_resident = weight_bytes * (1 if single_buffer_weights else 2)
    vmem_cap = _vmem_capacity_bytes()
    budget = max(int(vmem_cap * 0.80), 32 << 20)        # headroom for compiler scratch

    # per-batch-row cost: double-buffered I/O tiles + rough f32 activation temporaries
    io_row = 2 * (V * 2 + Kp * 4 + Wp * 4 + Vp * 4)
    act_row = 4 * (4 * Hp + 8 * Kp + 2 * Vp)
    row_bytes = io_row + act_row

    # ---- batch tiling (pipelined + megacore-parallel grid axis) ----
    avail = budget - weight_resident - (4 << 20)
    tb_fit = max(16, (max(avail, 0) // max(row_bytes, 1)) // 16 * 16)
    TB = int(min(512, tb_fit, max(16, _round_up(B, 16))))
    # ensure >=2 grid tiles when possible so a dual-TensorCore chip (v7x) splits the batch
    if _round_up(B, TB) // TB == 1 and TB >= 32:
        TB = TB // 2
    B_pad = _round_up(B, TB)

    if B_pad != B:
        x = jnp.pad(x, ((0, B_pad - B), (0, 0)))
        eps = jnp.pad(eps, ((0, B_pad - B), (0, 0)))
    if eps.shape[1] != Kp:
        eps = jnp.pad(eps, ((0, 0), (0, Kp - eps.shape[1])))
    x_m = x.astype(mxu_dtype)
    grid = (B_pad // TB,)

    inputs = (
        x_m, eps,
        pp["w1s"], pp["b1s"], pp["w12"], pp["b12"], pp["w2"], pp["b2"],
        pp["wg1"], pp["bg1"], pp["wg2"], pp["bg2"],
        pp["wg3"], pp["bg3"], pp["wg4"], pp["bg4"],
        pp["wd1"], pp["bd1"],
    )

    def blocked(shape):       # batch-tiled operand
        return pl.BlockSpec(shape, lambda i: (i, 0))

    def resident(shape):
        return _resident_spec(shape, single_buffer_weights)

    in_specs = [
        blocked((TB, V)), blocked((TB, Kp)),
        resident((V, 2 * Hp)), resident((1, 2 * Hp)),
        resident((Hp, Hp)), resident((1, Hp)),
        resident((Hp, 2 * Kp)), resident((1, 2 * Kp)),
        resident((Kp, Kp)), resident((1, Kp)),
        resident((Kp, Kp)), resident((1, Kp)),
        resident((Kp, Kp)), resident((1, Kp)),
        resident((Kp, Kp)), resident((1, Kp)),
        resident((Kp, Vp)), resident((1, Vp)),
    ]
    out_specs = (blocked((TB, Wp)), blocked((TB, Vp)))
    out_shape = (
        jax.ShapeDtypeStruct((B_pad, Wp), jnp.float32),   # [mu | logvar | z | g] (Kp-strided)
        jax.ShapeDtypeStruct((B_pad, Vp), jnp.float32),   # theta (lane-dense, padded vocab)
    )

    need = weight_resident + TB * row_bytes + (4 << 20)
    vmem_limit = int(min(max(need, 16 << 20), budget))

    flops = 2 * B_pad * (V * 2 * Hp + Hp * Hp + Hp * 2 * Kp + 4 * Kp * Kp + Kp * Vp)
    transcendentals = B_pad * (5 * Kp + Vp)               # exp(std) + 4 tanh + softmax exp
    bytes_accessed = weight_bytes + B_pad * (V * 2 + Kp * 4 + Wp * 4 + Vp * 4)

    kernel = functools.partial(gsm_kernel, Hp=Hp, Kp=Kp, mxu_dtype=mxu_dtype)
    packed, theta = pl.pallas_call(
        kernel,
        grid=grid,
        in_specs=in_specs,
        out_specs=out_specs,
        out_shape=out_shape,
        compiler_params=pltpu.CompilerParams(
            dimension_semantics=("parallel",),
            vmem_limit_bytes=vmem_limit,
        ),
        cost_estimate=pl.CostEstimate(
            flops=flops,
            transcendentals=transcendentals,
            bytes_accessed=bytes_accessed,
        ),
    )(*inputs)

    mu = packed[:B, 0:K]
    logvar = packed[:B, Kp:Kp + K]
    z = packed[:B, 2 * Kp:2 * Kp + K]
    g = packed[:B, 3 * Kp:3 * Kp + K]
    theta = theta[:B, :V]
    return z, g, theta, mu, logvar


def gsm_forward(x, eps, pp):
    try:
        return _gsm_forward_impl(x, eps, pp, single_buffer_weights=True)
    except Exception:
        # Fallback if this JAX build rejects pl.Buffered(1) for resident (constant-index) inputs.
        return _gsm_forward_impl(x, eps, pp, single_buffer_weights=False)


def init_params(key, input_dim, hidden_dim, topic_num):
    """Deterministic init mimicking nn.Linear default (uniform +-1/sqrt(fan_in)).

    Weights are stored as [in, out] (already transposed vs. PyTorch's [out, in]).
    Biases are stored as [1, out].
    """
    def linear(k, fan_in, fan_out, bias=True):
        kw, kb = jax.random.split(k)
        bound = 1.0 / jnp.sqrt(fan_in)
        w = jax.random.uniform(kw, (fan_in, fan_out), jnp.float32, -bound, bound)
        if not bias:
            return w, None
        b = jax.random.uniform(kb, (1, fan_out), jnp.float32, -bound, bound)
        return w, b

    keys = jax.random.split(key, 10)
    p = {}
    p["w11"], p["b11"] = linear(keys[0], input_dim, hidden_dim)
    p["w12"], p["b12"] = linear(keys[1], hidden_dim, hidden_dim)
    p["w21"], p["b21"] = linear(keys[2], hidden_dim, topic_num)
    p["w22"], p["b22"] = linear(keys[3], hidden_dim, topic_num)
    p["ws"], _ = linear(keys[4], input_dim, hidden_dim, bias=False)
    p["wg1"], p["bg1"] = linear(keys[5], topic_num, topic_num)
    p["wg2"], p["bg2"] = linear(keys[6], topic_num, topic_num)
    p["wg3"], p["bg3"] = linear(keys[7], topic_num, topic_num)
    p["wg4"], p["bg4"] = linear(keys[8], topic_num, topic_num)
    p["wd1"], p["bd1"] = linear(keys[9], topic_num, input_dim)
    return p


def gsm_reference(x, eps, p, mxu_dtype=jnp.float32):
    """Pure-JAX reference of the PyTorch forward (training mode).

    mxu_dtype mirrors the kernel's matmul-input precision (bf16) while keeping
    f32 accumulation and f32 elementwise math, so it can be compared tightly.
    """
    def dot(a, w):
        return jnp.dot(a.astype(mxu_dtype), w.astype(mxu_dtype),
                       preferred_element_type=jnp.float32)

    e1 = jnp.maximum(dot(x, p["w11"]) + p["b11"], 0.0)
    e1 = jnp.maximum(dot(e1, p["w12"]) + p["b12"], 0.0)
    e1 = e1 + dot(x, p["ws"])
    mu = dot(e1, p["w21"]) + p["b21"]
    logvar = dot(e1, p["w22"]) + p["b22"]
    z = eps * jnp.exp(0.5 * logvar) + mu
    g1 = jnp.tanh(dot(z, p["wg1"]) + p["bg1"])
    g1 = jnp.tanh(dot(g1, p["wg2"]) + p["bg2"])
    g1 = jnp.tanh(dot(g1, p["wg3"]) + p["bg3"])
    g1 = jnp.tanh(dot(g1, p["wg4"]) + p["bg4"])
    g = g1 + z
    theta = jax.nn.softmax(dot(g, p["wd1"]) + p["bd1"], axis=1)
    return z, g, theta, mu, logvar


if __name__ == "__main__":
    # Small shapes consistent with the module: bag-of-words input.
    batch, input_dim, hidden_dim, topic_num = 8, 64, 32, 16

    key = jax.random.PRNGKey(0)
    kx, keps, kp = jax.random.split(key, 3)

    x = jax.random.uniform(kx, (batch, input_dim), jnp.float32)       # x.view(-1, input_dim)
    eps = jax.random.normal(keps, (batch, topic_num), jnp.float32)    # torch.randn_like(std)
    params = init_params(kp, input_dim, hidden_dim, topic_num)
    pp = pack_params(params, mxu_dtype=jnp.bfloat16)

    outs = jax.block_until_ready(gsm_forward(x, eps, pp))

    # Correctness: tight vs. a reference with the same bf16 MXU-input precision,
    # loose vs. the full-f32 reference (bounds the bf16-weight approximation).
    refs_bf16 = gsm_reference(x, eps, params, mxu_dtype=jnp.bfloat16)
    refs_f32 = gsm_reference(x, eps, params, mxu_dtype=jnp.float32)
    names = ["z", "g", "theta", "mu", "logvar"]
    for name, o, rb, rf in zip(names, outs, refs_bf16, refs_f32):
        assert o.shape == rf.shape, (name, o.shape, rf.shape)
        err_b = float(jnp.max(jnp.abs(o - rb)))
        assert err_b < 5e-3, (name, "vs bf16 ref", err_b)
        err_f = float(jnp.max(jnp.abs(o - rf)))
        assert err_f < 5e-2, (name, "vs f32 ref", err_f)

    print("KERNEL_OK")
</pallas_src>

<mosaic_0001>
module attributes {stable_mosaic.version = 11 : i64} {
  func.func @gsm_kernel(%arg0: i32, %arg1: memref<16x64xbf16, #tpu.memory_space<vmem>>, %arg2: memref<16x128xf32, #tpu.memory_space<vmem>>, %arg3: memref<64x256xbf16, #tpu.memory_space<vmem>>, %arg4: memref<1x256xf32, #tpu.memory_space<vmem>>, %arg5: memref<128x128xbf16, #tpu.memory_space<vmem>>, %arg6: memref<1x128xf32, #tpu.memory_space<vmem>>, %arg7: memref<128x256xbf16, #tpu.memory_space<vmem>>, %arg8: memref<1x256xf32, #tpu.memory_space<vmem>>, %arg9: memref<128x128xbf16, #tpu.memory_space<vmem>>, %arg10: memref<1x128xf32, #tpu.memory_space<vmem>>, %arg11: memref<128x128xbf16, #tpu.memory_space<vmem>>, %arg12: memref<1x128xf32, #tpu.memory_space<vmem>>, %arg13: memref<128x128xbf16, #tpu.memory_space<vmem>>, %arg14: memref<1x128xf32, #tpu.memory_space<vmem>>, %arg15: memref<128x128xbf16, #tpu.memory_space<vmem>>, %arg16: memref<1x128xf32, #tpu.memory_space<vmem>>, %arg17: memref<128x128xbf16, #tpu.memory_space<vmem>>, %arg18: memref<1x128xf32, #tpu.memory_space<vmem>>, %arg19: memref<16x512xf32, #tpu.memory_space<vmem>>, %arg20: memref<16x128xf32, #tpu.memory_space<vmem>>) attributes {dimension_semantics = [#tpu.dimension_semantics<parallel>], iteration_bounds = array<i64: 1>, scalar_prefetch = 0 : i64, scratch_operands = 0 : i64, tpu.core_type = #tpu.core_type<tc>, window_params = [{transform_indices = @transform_0, window_bounds = array<i64: 16, 64>}, {transform_indices = @transform_1, window_bounds = array<i64: 16, 128>}, {pipeline_mode = #tpu.pipeline_mode<synchronous>, transform_indices = @transform_2, window_bounds = array<i64: 64, 256>}, {pipeline_mode = #tpu.pipeline_mode<synchronous>, transform_indices = @transform_3, window_bounds = array<i64: 1, 256>}, {pipeline_mode = #tpu.pipeline_mode<synchronous>, transform_indices = @transform_4, window_bounds = array<i64: 128, 128>}, {pipeline_mode = #tpu.pipeline_mode<synchronous>, transform_indices = @transform_5, window_bounds = array<i64: 1, 128>}, {pipeline_mode = #tpu.pipeline_mode<synchronous>, transform_indices = @transform_6, window_bounds = array<i64: 128, 256>}, {pipeline_mode = #tpu.pipeline_mode<synchronous>, transform_indices = @transform_7, window_bounds = array<i64: 1, 256>}, {pipeline_mode = #tpu.pipeline_mode<synchronous>, transform_indices = @transform_8, window_bounds = array<i64: 128, 128>}, {pipeline_mode = #tpu.pipeline_mode<synchronous>, transform_indices = @transform_9, window_bounds = array<i64: 1, 128>}, {pipeline_mode = #tpu.pipeline_mode<synchronous>, transform_indices = @transform_10, window_bounds = array<i64: 128, 128>}, {pipeline_mode = #tpu.pipeline_mode<synchronous>, transform_indices = @transform_11, window_bounds = array<i64: 1, 128>}, {pipeline_mode = #tpu.pipeline_mode<synchronous>, transform_indices = @transform_12, window_bounds = array<i64: 128, 128>}, {pipeline_mode = #tpu.pipeline_mode<synchronous>, transform_indices = @transform_13, window_bounds = array<i64: 1, 128>}, {pipeline_mode = #tpu.pipeline_mode<synchronous>, transform_indices = @transform_14, window_bounds = array<i64: 128, 128>}, {pipeline_mode = #tpu.pipeline_mode<synchronous>, transform_indices = @transform_15, window_bounds = array<i64: 1, 128>}, {pipeline_mode = #tpu.pipeline_mode<synchronous>, transform_indices = @transform_16, window_bounds = array<i64: 128, 128>}, {pipeline_mode = #tpu.pipeline_mode<synchronous>, transform_indices = @transform_17, window_bounds = array<i64: 1, 128>}, {transform_indices = @transform_18, window_bounds = array<i64: 16, 512>}, {transform_indices = @transform_19, window_bounds = array<i64: 16, 128>}]} {
    %c0 = arith.constant 0 : index
    %c0_0 = arith.constant 0 : index
    %0 = vector.load %arg1[%c0, %c0_0] : memref<16x64xbf16, #tpu.memory_space<vmem>>, vector<16x64xbf16>
    %c0_1 = arith.constant 0 : index
    %c0_2 = arith.constant 0 : index
    %1 = vector.load %arg3[%c0_1, %c0_2] : memref<64x256xbf16, #tpu.memory_space<vmem>>, vector<64x256xbf16>
    %cst = arith.constant dense<0.000000e+00> : vector<16x256xf32>
    %2 = tpu.matmul %0, %1, %cst {dimension_numbers = #tpu.dot_dimension_numbers<[1], [0], [0], [1], [0, 0, 1, 1], [], []>} : vector<16x64xbf16>, vector<64x256xbf16>, vector<16x256xf32> -> vector<16x256xf32>
    %c0_3 = arith.constant 0 : index
    %c0_4 = arith.constant 0 : index
    %3 = vector.load %arg4[%c0_3, %c0_4] : memref<1x256xf32, #tpu.memory_space<vmem>>, vector<1x256xf32>
    %4 = vector.broadcast %3 : vector<1x256xf32> to vector<16x256xf32>
    %5 = arith.addf %2, %4 : vector<16x256xf32>
    %6 = vector.extract_strided_slice %5 {offsets = [0, 0], sizes = [16, 128], strides = [1, 1]} : vector<16x256xf32> to vector<16x128xf32>
    %cst_5 = arith.constant 0.000000e+00 : f32
    %7 = vector.broadcast %cst_5 : f32 to vector<16x128xf32>
    %8 = arith.maximumf %6, %7 : vector<16x128xf32>
    %9 = vector.extract_strided_slice %5 {offsets = [0, 128], sizes = [16, 128], strides = [1, 1]} : vector<16x256xf32> to vector<16x128xf32>
    %10 = arith.truncf %8 : vector<16x128xf32> to vector<16x128xbf16>
    %c0_6 = arith.constant 0 : index
    %c0_7 = arith.constant 0 : index
    %11 = vector.load %arg5[%c0_6, %c0_7] : memref<128x128xbf16, #tpu.memory_space<vmem>>, vector<128x128xbf16>
    %cst_8 = arith.constant dense<0.000000e+00> : vector<16x128xf32>
    %12 = tpu.matmul %10, %11, %cst_8 {dimension_numbers = #tpu.dot_dimension_numbers<[1], [0], [0], [1], [0, 0, 1, 1], [], []>} : vector<16x128xbf16>, vector<128x128xbf16>, vector<16x128xf32> -> vector<16x128xf32>
    %c0_9 = arith.constant 0 : index
    %c0_10 = arith.constant 0 : index
    %13 = vector.load %arg6[%c0_9, %c0_10] : memref<1x128xf32, #tpu.memory_space<vmem>>, vector<1x128xf32>
    %14 = vector.broadcast %13 : vector<1x128xf32> to vector<16x128xf32>
    %15 = arith.addf %12, %14 : vector<16x128xf32>
    %cst_11 = arith.constant 0.000000e+00 : f32
    %16 = vector.broadcast %cst_11 : f32 to vector<16x128xf32>
    %17 = arith.maximumf %15, %16 : vector<16x128xf32>
    %18 = arith.addf %17, %9 : vector<16x128xf32>
    %19 = arith.truncf %18 : vector<16x128xf32> to vector<16x128xbf16>
    %c0_12 = arith.constant 0 : index
    %c0_13 = arith.constant 0 : index
    %20 = vector.load %arg7[%c0_12, %c0_13] : memref<128x256xbf16, #tpu.memory_space<vmem>>, vector<128x256xbf16>
    %cst_14 = arith.constant dense<0.000000e+00> : vector<16x256xf32>
    %21 = tpu.matmul %19, %20, %cst_14 {dimension_numbers = #tpu.dot_dimension_numbers<[1], [0], [0], [1], [0, 0, 1, 1], [], []>} : vector<16x128xbf16>, vector<128x256xbf16>, vector<16x256xf32> -> vector<16x256xf32>
    %c0_15 = arith.constant 0 : index
    %c0_16 = arith.constant 0 : index
    %22 = vector.load %arg8[%c0_15, %c0_16] : memref<1x256xf32, #tpu.memory_space<vmem>>, vector<1x256xf32>
    %23 = vector.broadcast %22 : vector<1x256xf32> to vector<16x256xf32>
    %24 = arith.addf %21, %23 : vector<16x256xf32>
    %25 = vector.extract_strided_slice %24 {offsets = [0, 0], sizes = [16, 128], strides = [1, 1]} : vector<16x256xf32> to vector<16x128xf32>
    %26 = vector.extract_strided_slice %24 {offsets = [0, 128], sizes = [16, 128], strides = [1, 1]} : vector<16x256xf32> to vector<16x128xf32>
    %cst_17 = arith.constant 5.000000e-01 : f32
    %27 = vector.broadcast %cst_17 : f32 to vector<16x128xf32>
    %28 = arith.mulf %27, %26 : vector<16x128xf32>
    %29 = math.exp %28 : vector<16x128xf32>
    %c0_18 = arith.constant 0 : index
    %c0_19 = arith.constant 0 : index
    %30 = vector.load %arg2[%c0_18, %c0_19] : memref<16x128xf32, #tpu.memory_space<vmem>>, vector<16x128xf32>
    %31 = arith.mulf %30, %29 : vector<16x128xf32>
    %32 = arith.addf %31, %25 : vector<16x128xf32>
    %33 = arith.truncf %32 : vector<16x128xf32> to vector<16x128xbf16>
    %c0_20 = arith.constant 0 : index
    %c0_21 = arith.constant 0 : index
    %34 = vector.load %arg9[%c0_20, %c0_21] : memref<128x128xbf16, #tpu.memory_space<vmem>>, vector<128x128xbf16>
    %cst_22 = arith.constant dense<0.000000e+00> : vector<16x128xf32>
    %35 = tpu.matmul %33, %34, %cst_22 {dimension_numbers = #tpu.dot_dimension_numbers<[1], [0], [0], [1], [0, 0, 1, 1], [], []>} : vector<16x128xbf16>, vector<128x128xbf16>, vector<16x128xf32> -> vector<16x128xf32>
    %c0_23 = arith.constant 0 : index
    %c0_24 = arith.constant 0 : index
    %36 = vector.load %arg10[%c0_23, %c0_24] : memref<1x128xf32, #tpu.memory_space<vmem>>, vector<1x128xf32>
    %37 = vector.broadcast %36 : vector<1x128xf32> to vector<16x128xf32>
    %38 = arith.addf %35, %37 : vector<16x128xf32>
    %39 = math.tanh %38 : vector<16x128xf32>
    %40 = arith.truncf %39 : vector<16x128xf32> to vector<16x128xbf16>
    %c0_25 = arith.constant 0 : index
    %c0_26 = arith.constant 0 : index
    %41 = vector.load %arg11[%c0_25, %c0_26] : memref<128x128xbf16, #tpu.memory_space<vmem>>, vector<128x128xbf16>
    %cst_27 = arith.constant dense<0.000000e+00> : vector<16x128xf32>
    %42 = tpu.matmul %40, %41, %cst_27 {dimension_numbers = #tpu.dot_dimension_numbers<[1], [0], [0], [1], [0, 0, 1, 1], [], []>} : vector<16x128xbf16>, vector<128x128xbf16>, vector<16x128xf32> -> vector<16x128xf32>
    %c0_28 = arith.constant 0 : index
    %c0_29 = arith.constant 0 : index
    %43 = vector.load %arg12[%c0_28, %c0_29] : memref<1x128xf32, #tpu.memory_space<vmem>>, vector<1x128xf32>
    %44 = vector.broadcast %43 : vector<1x128xf32> to vector<16x128xf32>
    %45 = arith.addf %42, %44 : vector<16x128xf32>
    %46 = math.tanh %45 : vector<16x128xf32>
    %47 = arith.truncf %46 : vector<16x128xf32> to vector<16x128xbf16>
    %c0_30 = arith.constant 0 : index
    %c0_31 = arith.constant 0 : index
    %48 = vector.load %arg13[%c0_30, %c0_31] : memref<128x128xbf16, #tpu.memory_space<vmem>>, vector<128x128xbf16>
    %cst_32 = arith.constant dense<0.000000e+00> : vector<16x128xf32>
    %49 = tpu.matmul %47, %48, %cst_32 {dimension_numbers = #tpu.dot_dimension_numbers<[1], [0], [0], [1], [0, 0, 1, 1], [], []>} : vector<16x128xbf16>, vector<128x128xbf16>, vector<16x128xf32> -> vector<16x128xf32>
    %c0_33 = arith.constant 0 : index
    %c0_34 = arith.constant 0 : index
    %50 = vector.load %arg14[%c0_33, %c0_34] : memref<1x128xf32, #tpu.memory_space<vmem>>, vector<1x128xf32>
    %51 = vector.broadcast %50 : vector<1x128xf32> to vector<16x128xf32>
    %52 = arith.addf %49, %51 : vector<16x128xf32>
    %53 = math.tanh %52 : vector<16x128xf32>
    %54 = arith.truncf %53 : vector<16x128xf32> to vector<16x128xbf16>
    %c0_35 = arith.constant 0 : index
    %c0_36 = arith.constant 0 : index
    %55 = vector.load %arg15[%c0_35, %c0_36] : memref<128x128xbf16, #tpu.memory_space<vmem>>, vector<128x128xbf16>
    %cst_37 = arith.constant dense<0.000000e+00> : vector<16x128xf32>
    %56 = tpu.matmul %54, %55, %cst_37 {dimension_numbers = #tpu.dot_dimension_numbers<[1], [0], [0], [1], [0, 0, 1, 1], [], []>} : vector<16x128xbf16>, vector<128x128xbf16>, vector<16x128xf32> -> vector<16x128xf32>
    %c0_38 = arith.constant 0 : index
    %c0_39 = arith.constant 0 : index
    %57 = vector.load %arg16[%c0_38, %c0_39] : memref<1x128xf32, #tpu.memory_space<vmem>>, vector<1x128xf32>
    %58 = vector.broadcast %57 : vector<1x128xf32> to vector<16x128xf32>
    %59 = arith.addf %56, %58 : vector<16x128xf32>
    %60 = math.tanh %59 : vector<16x128xf32>
    %61 = arith.addf %60, %32 : vector<16x128xf32>
    %62 = arith.truncf %61 : vector<16x128xf32> to vector<16x128xbf16>
    %c0_40 = arith.constant 0 : index
    %c0_41 = arith.constant 0 : index
    %63 = vector.load %arg17[%c0_40, %c0_41] : memref<128x128xbf16, #tpu.memory_space<vmem>>, vector<128x128xbf16>
    %cst_42 = arith.constant dense<0.000000e+00> : vector<16x128xf32>
    %64 = tpu.matmul %62, %63, %cst_42 {dimension_numbers = #tpu.dot_dimension_numbers<[1], [0], [0], [1], [0, 0, 1, 1], [], []>} : vector<16x128xbf16>, vector<128x128xbf16>, vector<16x128xf32> -> vector<16x128xf32>
    %c0_43 = arith.constant 0 : index
    %c0_44 = arith.constant 0 : index
    %65 = vector.load %arg18[%c0_43, %c0_44] : memref<1x128xf32, #tpu.memory_space<vmem>>, vector<1x128xf32>
    %66 = vector.broadcast %65 : vector<1x128xf32> to vector<16x128xf32>
    %67 = arith.addf %64, %66 : vector<16x128xf32>
    %cst_45 = arith.constant dense<0xFF800000> : vector<16xf32>
    %68 = vector.multi_reduction <maximumf>, %67, %cst_45 [1] : vector<16x128xf32> to vector<16xf32>
    %69 = vector.shape_cast %68 : vector<16xf32> to vector<16x1xf32>
    %70 = vector.broadcast %69 : vector<16x1xf32> to vector<16x128xf32>
    %71 = arith.subf %67, %70 : vector<16x128xf32>
    %72 = math.exp %71 : vector<16x128xf32>
    %cst_46 = arith.constant dense<0.000000e+00> : vector<16xf32>
    %73 = vector.multi_reduction <add>, %72, %cst_46 [1] : vector<16x128xf32> to vector<16xf32>
    %74 = vector.shape_cast %73 : vector<16xf32> to vector<16x1xf32>
    %75 = tpu.reciprocal %74 {approx = true} : vector<16x1xf32> -> vector<16x1xf32>
    %76 = arith.mulf %74, %75 : vector<16x1xf32>
    %cst_47 = arith.constant 2.000000e+00 : f32
    %77 = vector.broadcast %cst_47 : f32 to vector<16x1xf32>
    %78 = arith.subf %77, %76 : vector<16x1xf32>
    %79 = arith.mulf %75, %78 : vector<16x1xf32>
    %80 = vector.broadcast %79 : vector<16x1xf32> to vector<16x128xf32>
    %81 = arith.mulf %72, %80 : vector<16x128xf32>
    %c0_48 = arith.constant 0 : index
    %c0_49 = arith.constant 0 : index
    %82 = vector.load %arg20[%c0_48, %c0_49] : memref<16x128xf32, #tpu.memory_space<vmem>>, vector<16x128xf32>
    tpu.vector_store %arg20[%c0_48, %c0_49], %81 {strides = array<i32>} : memref<16x128xf32, #tpu.memory_space<vmem>>, vector<16x128xf32>,
    %c0_50 = arith.constant 0 : index
    %c0_51 = arith.constant 0 : index
    %83 = vector.load %arg19[%c0_50, %c0_51] : memref<16x512xf32, #tpu.memory_space<vmem>>, vector<16x256xf32>
    tpu.vector_store %arg19[%c0_50, %c0_51], %24 {strides = array<i32>} : memref<16x512xf32, #tpu.memory_space<vmem>>, vector<16x256xf32>,
    %c0_52 = arith.constant 0 : index
    %c256 = arith.constant 256 : index
    %84 = vector.load %arg19[%c0_52, %c256] : memref<16x512xf32, #tpu.memory_space<vmem>>, vector<16x128xf32>
    tpu.vector_store %arg19[%c0_52, %c256], %32 {strides = array<i32>} : memref<16x512xf32, #tpu.memory_space<vmem>>, vector<16x128xf32>,
    %c0_53 = arith.constant 0 : index
    %c384 = arith.constant 384 : index
    %85 = vector.load %arg19[%c0_53, %c384] : memref<16x512xf32, #tpu.memory_space<vmem>>, vector<16x128xf32>
    tpu.vector_store %arg19[%c0_53, %c384], %61 {strides = array<i32>} : memref<16x512xf32, #tpu.memory_space<vmem>>, vector<16x128xf32>,
    return
  }
  func.func @transform_0(%arg0: i32) -> (i32, i32) {
    %c0_i32 = arith.constant 0 : i32
    %c0_i32_0 = arith.constant 0 : i32
    return %arg0, %c0_i32 : i32, i32
  }
  func.func @transform_1(%arg0: i32) -> (i32, i32) {
    %c0_i32 = arith.constant 0 : i32
    %c0_i32_0 = arith.constant 0 : i32
    return %arg0, %c0_i32 : i32, i32
  }
  func.func @transform_2(%arg0: i32) -> (i32, i32) {
    %c0_i32 = arith.constant 0 : i32
    %c0_i32_0 = arith.constant 0 : i32
    %c0_i32_1 = arith.constant 0 : i32
    return %c0_i32, %c0_i32_0 : i32, i32
  }
  func.func @transform_3(%arg0: i32) -> (i32, i32) {
    %c0_i32 = arith.constant 0 : i32
    %c0_i32_0 = arith.constant 0 : i32
    %c0_i32_1 = arith.constant 0 : i32
    return %c0_i32, %c0_i32_0 : i32, i32
  }
  func.func @transform_4(%arg0: i32) -> (i32, i32) {
    %c0_i32 = arith.constant 0 : i32
    %c0_i32_0 = arith.constant 0 : i32
    %c0_i32_1 = arith.constant 0 : i32
    return %c0_i32, %c0_i32_0 : i32, i32
  }
  func.func @transform_5(%arg0: i32) -> (i32, i32) {
    %c0_i32 = arith.constant 0 : i32
    %c0_i32_0 = arith.constant 0 : i32
    %c0_i32_1 = arith.constant 0 : i32
    return %c0_i32, %c0_i32_0 : i32, i32
  }
  func.func @transform_6(%arg0: i32) -> (i32, i32) {
    %c0_i32 = arith.constant 0 : i32
    %c0_i32_0 = arith.constant 0 : i32
    %c0_i32_1 = arith.constant 0 : i32
    return %c0_i32, %c0_i32_0 : i32, i32
  }
  func.func @transform_7(%arg0: i32) -> (i32, i32) {
    %c0_i32 = arith.constant 0 : i32
    %c0_i32_0 = arith.constant 0 : i32
    %c0_i32_1 = arith.constant 0 : i32
    return %c0_i32, %c0_i32_0 : i32, i32
  }
  func.func @transform_8(%arg0: i32) -> (i32, i32) {
    %c0_i32 = arith.constant 0 : i32
    %c0_i32_0 = arith.constant 0 : i32
    %c0_i32_1 = arith.constant 0 : i32
    return %c0_i32, %c0_i32_0 : i32, i32
  }
  func.func @transform_9(%arg0: i32) -> (i32, i32) {
    %c0_i32 = arith.constant 0 : i32
    %c0_i32_0 = arith.constant 0 : i32
    %c0_i32_1 = arith.constant 0 : i32
    return %c0_i32, %c0_i32_0 : i32, i32
  }
  func.func @transform_10(%arg0: i32) -> (i32, i32) {
    %c0_i32 = arith.constant 0 : i32
    %c0_i32_0 = arith.constant 0 : i32
    %c0_i32_1 = arith.constant 0 : i32
    return %c0_i32, %c0_i32_0 : i32, i32
  }
  func.func @transform_11(%arg0: i32) -> (i32, i32) {
    %c0_i32 = arith.constant 0 : i32
    %c0_i32_0 = arith.constant 0 : i32
    %c0_i32_1 = arith.constant 0 : i32
    return %c0_i32, %c0_i32_0 : i32, i32
  }
  func.func @transform_12(%arg0: i32) -> (i32, i32) {
    %c0_i32 = arith.constant 0 : i32
    %c0_i32_0 = arith.constant 0 : i32
    %c0_i32_1 = arith.constant 0 : i32
    return %c0_i32, %c0_i32_0 : i32, i32
  }
  func.func @transform_13(%arg0: i32) -> (i32, i32) {
    %c0_i32 = arith.constant 0 : i32
    %c0_i32_0 = arith.constant 0 : i32
    %c0_i32_1 = arith.constant 0 : i32
    return %c0_i32, %c0_i32_0 : i32, i32
  }
  func.func @transform_14(%arg0: i32) -> (i32, i32) {
    %c0_i32 = arith.constant 0 : i32
    %c0_i32_0 = arith.constant 0 : i32
    %c0_i32_1 = arith.constant 0 : i32
    return %c0_i32, %c0_i32_0 : i32, i32
  }
  func.func @transform_15(%arg0: i32) -> (i32, i32) {
    %c0_i32 = arith.constant 0 : i32
    %c0_i32_0 = arith.constant 0 : i32
    %c0_i32_1 = arith.constant 0 : i32
    return %c0_i32, %c0_i32_0 : i32, i32
  }
  func.func @transform_16(%arg0: i32) -> (i32, i32) {
    %c0_i32 = arith.constant 0 : i32
    %c0_i32_0 = arith.constant 0 : i32
    %c0_i32_1 = arith.constant 0 : i32
    return %c0_i32, %c0_i32_0 : i32, i32
  }
  func.func @transform_17(%arg0: i32) -> (i32, i32) {
    %c0_i32 = arith.constant 0 : i32
    %c0_i32_0 = arith.constant 0 : i32
    %c0_i32_1 = arith.constant 0 : i32
    return %c0_i32, %c0_i32_0 : i32, i32
  }
  func.func @transform_18(%arg0: i32) -> (i32, i32) {
    %c0_i32 = arith.constant 0 : i32
    %c0_i32_0 = arith.constant 0 : i32
    return %arg0, %c0_i32 : i32, i32
  }
  func.func @transform_19(%arg0: i32) -> (i32, i32) {
    %c0_i32 = arith.constant 0 : i32
    %c0_i32_0 = arith.constant 0 : i32
    return %arg0, %c0_i32 : i32, i32
  }
}

module attributes {stable_mosaic.version = 11 : i64} {
  func.func @gsm_kernel(%arg0: i32, %arg1: memref<16x64xbf16, #tpu.memory_space<vmem>>, %arg2: memref<16x128xf32, #tpu.memory_space<vmem>>, %arg3: memref<64x256xbf16, #tpu.memory_space<vmem>>, %arg4: memref<1x256xf32, #tpu.memory_space<vmem>>, %arg5: memref<128x128xbf16, #tpu.memory_space<vmem>>, %arg6: memref<1x128xf32, #tpu.memory_space<vmem>>, %arg7: memref<128x256xbf16, #tpu.memory_space<vmem>>, %arg8: memref<1x256xf32, #tpu.memory_space<vmem>>, %arg9: memref<128x128xbf16, #tpu.memory_space<vmem>>, %arg10: memref<1x128xf32, #tpu.memory_space<vmem>>, %arg11: memref<128x128xbf16, #tpu.memory_space<vmem>>, %arg12: memref<1x128xf32, #tpu.memory_space<vmem>>, %arg13: memref<128x128xbf16, #tpu.memory_space<vmem>>, %arg14: memref<1x128xf32, #tpu.memory_space<vmem>>, %arg15: memref<128x128xbf16, #tpu.memory_space<vmem>>, %arg16: memref<1x128xf32, #tpu.memory_space<vmem>>, %arg17: memref<128x128xbf16, #tpu.memory_space<vmem>>, %arg18: memref<1x128xf32, #tpu.memory_space<vmem>>, %arg19: memref<16x512xf32, #tpu.memory_space<vmem>>, %arg20: memref<16x128xf32, #tpu.memory_space<vmem>>) attributes {dimension_semantics = [#tpu.dimension_semantics<parallel>], iteration_bounds = array<i64: 1>, scalar_prefetch = 0 : i64, scratch_operands = 0 : i64, tpu.core_type = #tpu.core_type<tc>, window_params = [{transform_indices = @transform_0, window_bounds = array<i64: 16, 64>}, {transform_indices = @transform_1, window_bounds = array<i64: 16, 128>}, {pipeline_mode = #tpu.pipeline_mode<synchronous>, transform_indices = @transform_2, window_bounds = array<i64: 64, 256>}, {pipeline_mode = #tpu.pipeline_mode<synchronous>, transform_indices = @transform_3, window_bounds = array<i64: 1, 256>}, {pipeline_mode = #tpu.pipeline_mode<synchronous>, transform_indices = @transform_4, window_bounds = array<i64: 128, 128>}, {pipeline_mode = #tpu.pipeline_mode<synchronous>, transform_indices = @transform_5, window_bounds = array<i64: 1, 128>}, {pipeline_mode = #tpu.pipeline_mode<synchronous>, transform_indices = @transform_6, window_bounds = array<i64: 128, 256>}, {pipeline_mode = #tpu.pipeline_mode<synchronous>, transform_indices = @transform_7, window_bounds = array<i64: 1, 256>}, {pipeline_mode = #tpu.pipeline_mode<synchronous>, transform_indices = @transform_8, window_bounds = array<i64: 128, 128>}, {pipeline_mode = #tpu.pipeline_mode<synchronous>, transform_indices = @transform_9, window_bounds = array<i64: 1, 128>}, {pipeline_mode = #tpu.pipeline_mode<synchronous>, transform_indices = @transform_10, window_bounds = array<i64: 128, 128>}, {pipeline_mode = #tpu.pipeline_mode<synchronous>, transform_indices = @transform_11, window_bounds = array<i64: 1, 128>}, {pipeline_mode = #tpu.pipeline_mode<synchronous>, transform_indices = @transform_12, window_bounds = array<i64: 128, 128>}, {pipeline_mode = #tpu.pipeline_mode<synchronous>, transform_indices = @transform_13, window_bounds = array<i64: 1, 128>}, {pipeline_mode = #tpu.pipeline_mode<synchronous>, transform_indices = @transform_14, window_bounds = array<i64: 128, 128>}, {pipeline_mode = #tpu.pipeline_mode<synchronous>, transform_indices = @transform_15, window_bounds = array<i64: 1, 128>}, {pipeline_mode = #tpu.pipeline_mode<synchronous>, transform_indices = @transform_16, window_bounds = array<i64: 128, 128>}, {pipeline_mode = #tpu.pipeline_mode<synchronous>, transform_indices = @transform_17, window_bounds = array<i64: 1, 128>}, {transform_indices = @transform_18, window_bounds = array<i64: 16, 512>}, {transform_indices = @transform_19, window_bounds = array<i64: 16, 128>}]} {
    %c0 = arith.constant 0 : index
    %c0_0 = arith.constant 0 : index
    %0 = vector.load %arg1[%c0, %c0_0] : memref<16x64xbf16, #tpu.memory_space<vmem>>, vector<16x64xbf16>
    %c0_1 = arith.constant 0 : index
    %c0_2 = arith.constant 0 : index
    %1 = vector.load %arg3[%c0_1, %c0_2] : memref<64x256xbf16, #tpu.memory_space<vmem>>, vector<64x256xbf16>
    %cst = arith.constant dense<0.000000e+00> : vector<16x256xf32>
    %2 = tpu.matmul %0, %1, %cst {dimension_numbers = #tpu.dot_dimension_numbers<[1], [0], [0], [1], [0, 0, 1, 1], [], []>} : vector<16x64xbf16>, vector<64x256xbf16>, vector<16x256xf32> -> vector<16x256xf32>
    %c0_3 = arith.constant 0 : index
    %c0_4 = arith.constant 0 : index
    %3 = vector.load %arg4[%c0_3, %c0_4] : memref<1x256xf32, #tpu.memory_space<vmem>>, vector<1x256xf32>
    %4 = vector.broadcast %3 : vector<1x256xf32> to vector<16x256xf32>
    %5 = arith.addf %2, %4 : vector<16x256xf32>
    %6 = vector.extract_strided_slice %5 {offsets = [0, 0], sizes = [16, 128], strides = [1, 1]} : vector<16x256xf32> to vector<16x128xf32>
    %cst_5 = arith.constant 0.000000e+00 : f32
    %7 = vector.broadcast %cst_5 : f32 to vector<16x128xf32>
    %8 = arith.maximumf %6, %7 : vector<16x128xf32>
    %9 = vector.extract_strided_slice %5 {offsets = [0, 128], sizes = [16, 128], strides = [1, 1]} : vector<16x256xf32> to vector<16x128xf32>
    %10 = arith.truncf %8 : vector<16x128xf32> to vector<16x128xbf16>
    %c0_6 = arith.constant 0 : index
    %c0_7 = arith.constant 0 : index
    %11 = vector.load %arg5[%c0_6, %c0_7] : memref<128x128xbf16, #tpu.memory_space<vmem>>, vector<128x128xbf16>
    %cst_8 = arith.constant dense<0.000000e+00> : vector<16x128xf32>
    %12 = tpu.matmul %10, %11, %cst_8 {dimension_numbers = #tpu.dot_dimension_numbers<[1], [0], [0], [1], [0, 0, 1, 1], [], []>} : vector<16x128xbf16>, vector<128x128xbf16>, vector<16x128xf32> -> vector<16x128xf32>
    %c0_9 = arith.constant 0 : index
    %c0_10 = arith.constant 0 : index
    %13 = vector.load %arg6[%c0_9, %c0_10] : memref<1x128xf32, #tpu.memory_space<vmem>>, vector<1x128xf32>
    %14 = vector.broadcast %13 : vector<1x128xf32> to vector<16x128xf32>
    %15 = arith.addf %12, %14 : vector<16x128xf32>
    %cst_11 = arith.constant 0.000000e+00 : f32
    %16 = vector.broadcast %cst_11 : f32 to vector<16x128xf32>
    %17 = arith.maximumf %15, %16 : vector<16x128xf32>
    %18 = arith.addf %17, %9 : vector<16x128xf32>
    %19 = arith.truncf %18 : vector<16x128xf32> to vector<16x128xbf16>
    %c0_12 = arith.constant 0 : index
    %c0_13 = arith.constant 0 : index
    %20 = vector.load %arg7[%c0_12, %c0_13] : memref<128x256xbf16, #tpu.memory_space<vmem>>, vector<128x256xbf16>
    %cst_14 = arith.constant dense<0.000000e+00> : vector<16x256xf32>
    %21 = tpu.matmul %19, %20, %cst_14 {dimension_numbers = #tpu.dot_dimension_numbers<[1], [0], [0], [1], [0, 0, 1, 1], [], []>} : vector<16x128xbf16>, vector<128x256xbf16>, vector<16x256xf32> -> vector<16x256xf32>
    %c0_15 = arith.constant 0 : index
    %c0_16 = arith.constant 0 : index
    %22 = vector.load %arg8[%c0_15, %c0_16] : memref<1x256xf32, #tpu.memory_space<vmem>>, vector<1x256xf32>
    %23 = vector.broadcast %22 : vector<1x256xf32> to vector<16x256xf32>
    %24 = arith.addf %21, %23 : vector<16x256xf32>
    %25 = vector.extract_strided_slice %24 {offsets = [0, 0], sizes = [16, 128], strides = [1, 1]} : vector<16x256xf32> to vector<16x128xf32>
    %26 = vector.extract_strided_slice %24 {offsets = [0, 128], sizes = [16, 128], strides = [1, 1]} : vector<16x256xf32> to vector<16x128xf32>
    %cst_17 = arith.constant 5.000000e-01 : f32
    %27 = vector.broadcast %cst_17 : f32 to vector<16x128xf32>
    %28 = arith.mulf %27, %26 : vector<16x128xf32>
    %29 = math.exp %28 : vector<16x128xf32>
    %c0_18 = arith.constant 0 : index
    %c0_19 = arith.constant 0 : index
    %30 = vector.load %arg2[%c0_18, %c0_19] : memref<16x128xf32, #tpu.memory_space<vmem>>, vector<16x128xf32>
    %31 = arith.mulf %30, %29 : vector<16x128xf32>
    %32 = arith.addf %31, %25 : vector<16x128xf32>
    %33 = arith.truncf %32 : vector<16x128xf32> to vector<16x128xbf16>
    %c0_20 = arith.constant 0 : index
    %c0_21 = arith.constant 0 : index
    %34 = vector.load %arg9[%c0_20, %c0_21] : memref<128x128xbf16, #tpu.memory_space<vmem>>, vector<128x128xbf16>
    %cst_22 = arith.constant dense<0.000000e+00> : vector<16x128xf32>
    %35 = tpu.matmul %33, %34, %cst_22 {dimension_numbers = #tpu.dot_dimension_numbers<[1], [0], [0], [1], [0, 0, 1, 1], [], []>} : vector<16x128xbf16>, vector<128x128xbf16>, vector<16x128xf32> -> vector<16x128xf32>
    %c0_23 = arith.constant 0 : index
    %c0_24 = arith.constant 0 : index
    %36 = vector.load %arg10[%c0_23, %c0_24] : memref<1x128xf32, #tpu.memory_space<vmem>>, vector<1x128xf32>
    %37 = vector.broadcast %36 : vector<1x128xf32> to vector<16x128xf32>
    %38 = arith.addf %35, %37 : vector<16x128xf32>
    %39 = math.tanh %38 : vector<16x128xf32>
    %40 = arith.truncf %39 : vector<16x128xf32> to vector<16x128xbf16>
    %c0_25 = arith.constant 0 : index
    %c0_26 = arith.constant 0 : index
    %41 = vector.load %arg11[%c0_25, %c0_26] : memref<128x128xbf16, #tpu.memory_space<vmem>>, vector<128x128xbf16>
    %cst_27 = arith.constant dense<0.000000e+00> : vector<16x128xf32>
    %42 = tpu.matmul %40, %41, %cst_27 {dimension_numbers = #tpu.dot_dimension_numbers<[1], [0], [0], [1], [0, 0, 1, 1], [], []>} : vector<16x128xbf16>, vector<128x128xbf16>, vector<16x128xf32> -> vector<16x128xf32>
    %c0_28 = arith.constant 0 : index
    %c0_29 = arith.constant 0 : index
    %43 = vector.load %arg12[%c0_28, %c0_29] : memref<1x128xf32, #tpu.memory_space<vmem>>, vector<1x128xf32>
    %44 = vector.broadcast %43 : vector<1x128xf32> to vector<16x128xf32>
    %45 = arith.addf %42, %44 : vector<16x128xf32>
    %46 = math.tanh %45 : vector<16x128xf32>
    %47 = arith.truncf %46 : vector<16x128xf32> to vector<16x128xbf16>
    %c0_30 = arith.constant 0 : index
    %c0_31 = arith.constant 0 : index
    %48 = vector.load %arg13[%c0_30, %c0_31] : memref<128x128xbf16, #tpu.memory_space<vmem>>, vector<128x128xbf16>
    %cst_32 = arith.constant dense<0.000000e+00> : vector<16x128xf32>
    %49 = tpu.matmul %47, %48, %cst_32 {dimension_numbers = #tpu.dot_dimension_numbers<[1], [0], [0], [1], [0, 0, 1, 1], [], []>} : vector<16x128xbf16>, vector<128x128xbf16>, vector<16x128xf32> -> vector<16x128xf32>
    %c0_33 = arith.constant 0 : index
    %c0_34 = arith.constant 0 : index
    %50 = vector.load %arg14[%c0_33, %c0_34] : memref<1x128xf32, #tpu.memory_space<vmem>>, vector<1x128xf32>
    %51 = vector.broadcast %50 : vector<1x128xf32> to vector<16x128xf32>
    %52 = arith.addf %49, %51 : vector<16x128xf32>
    %53 = math.tanh %52 : vector<16x128xf32>
    %54 = arith.truncf %53 : vector<16x128xf32> to vector<16x128xbf16>
    %c0_35 = arith.constant 0 : index
    %c0_36 = arith.constant 0 : index
    %55 = vector.load %arg15[%c0_35, %c0_36] : memref<128x128xbf16, #tpu.memory_space<vmem>>, vector<128x128xbf16>
    %cst_37 = arith.constant dense<0.000000e+00> : vector<16x128xf32>
    %56 = tpu.matmul %54, %55, %cst_37 {dimension_numbers = #tpu.dot_dimension_numbers<[1], [0], [0], [1], [0, 0, 1, 1], [], []>} : vector<16x128xbf16>, vector<128x128xbf16>, vector<16x128xf32> -> vector<16x128xf32>
    %c0_38 = arith.constant 0 : index
    %c0_39 = arith.constant 0 : index
    %57 = vector.load %arg16[%c0_38, %c0_39] : memref<1x128xf32, #tpu.memory_space<vmem>>, vector<1x128xf32>
    %58 = vector.broadcast %57 : vector<1x128xf32> to vector<16x128xf32>
    %59 = arith.addf %56, %58 : vector<16x128xf32>
    %60 = math.tanh %59 : vector<16x128xf32>
    %61 = arith.addf %60, %32 : vector<16x128xf32>
    %62 = arith.truncf %61 : vector<16x128xf32> to vector<16x128xbf16>
    %c0_40 = arith.constant 0 : index
    %c0_41 = arith.constant 0 : index
    %63 = vector.load %arg17[%c0_40, %c0_41] : memref<128x128xbf16, #tpu.memory_space<vmem>>, vector<128x128xbf16>
    %cst_42 = arith.constant dense<0.000000e+00> : vector<16x128xf32>
    %64 = tpu.matmul %62, %63, %cst_42 {dimension_numbers = #tpu.dot_dimension_numbers<[1], [0], [0], [1], [0, 0, 1, 1], [], []>} : vector<16x128xbf16>, vector<128x128xbf16>, vector<16x128xf32> -> vector<16x128xf32>
    %c0_43 = arith.constant 0 : index
    %c0_44 = arith.constant 0 : index
    %65 = vector.load %arg18[%c0_43, %c0_44] : memref<1x128xf32, #tpu.memory_space<vmem>>, vector<1x128xf32>
    %66 = vector.broadcast %65 : vector<1x128xf32> to vector<16x128xf32>
    %67 = arith.addf %64, %66 : vector<16x128xf32>
    %cst_45 = arith.constant dense<0xFF800000> : vector<16xf32>
    %68 = vector.multi_reduction <maximumf>, %67, %cst_45 [1] : vector<16x128xf32> to vector<16xf32>
    %69 = vector.shape_cast %68 : vector<16xf32> to vector<16x1xf32>
    %70 = vector.broadcast %69 : vector<16x1xf32> to vector<16x128xf32>
    %71 = arith.subf %67, %70 : vector<16x128xf32>
    %72 = math.exp %71 : vector<16x128xf32>
    %cst_46 = arith.constant dense<0.000000e+00> : vector<16xf32>
    %73 = vector.multi_reduction <add>, %72, %cst_46 [1] : vector<16x128xf32> to vector<16xf32>
    %74 = vector.shape_cast %73 : vector<16xf32> to vector<16x1xf32>
    %75 = tpu.reciprocal %74 {approx = true} : vector<16x1xf32> -> vector<16x1xf32>
    %76 = arith.mulf %74, %75 : vector<16x1xf32>
    %cst_47 = arith.constant 2.000000e+00 : f32
    %77 = vector.broadcast %cst_47 : f32 to vector<16x1xf32>
    %78 = arith.subf %77, %76 : vector<16x1xf32>
    %79 = arith.mulf %75, %78 : vector<16x1xf32>
    %80 = vector.broadcast %79 : vector<16x1xf32> to vector<16x128xf32>
    %81 = arith.mulf %72, %80 : vector<16x128xf32>
    %c0_48 = arith.constant 0 : index
    %c0_49 = arith.constant 0 : index
    %82 = vector.load %arg20[%c0_48, %c0_49] : memref<16x128xf32, #tpu.memory_space<vmem>>, vector<16x128xf32>
    tpu.vector_store %arg20[%c0_48, %c0_49], %81 {strides = array<i32>} : memref<16x128xf32, #tpu.memory_space<vmem>>, vector<16x128xf32>,
    %c0_50 = arith.constant 0 : index
    %c0_51 = arith.constant 0 : index
    %83 = vector.load %arg19[%c0_50, %c0_51] : memref<16x512xf32, #tpu.memory_space<vmem>>, vector<16x256xf32>
    tpu.vector_store %arg19[%c0_50, %c0_51], %24 {strides = array<i32>} : memref<16x512xf32, #tpu.memory_space<vmem>>, vector<16x256xf32>,
    %c0_52 = arith.constant 0 : index
    %c256 = arith.constant 256 : index
    %84 = vector.load %arg19[%c0_52, %c256] : memref<16x512xf32, #tpu.memory_space<vmem>>, vector<16x128xf32>
    tpu.vector_store %arg19[%c0_52, %c256], %32 {strides = array<i32>} : memref<16x512xf32, #tpu.memory_space<vmem>>, vector<16x128xf32>,
    %c0_53 = arith.constant 0 : index
    %c384 = arith.constant 384 : index
    %85 = vector.load %arg19[%c0_53, %c384] : memref<16x512xf32, #tpu.memory_space<vmem>>, vector<16x128xf32>
    tpu.vector_store %arg19[%c0_53, %c384], %61 {strides = array<i32>} : memref<16x512xf32, #tpu.memory_space<vmem>>, vector<16x128xf32>,
    return
  }
  func.func @transform_0(%arg0: i32) -> (i32, i32) {
    %c0_i32 = arith.constant 0 : i32
    %c0_i32_0 = arith.constant 0 : i32
    return %arg0, %c0_i32 : i32, i32
  }
  func.func @transform_1(%arg0: i32) -> (i32, i32) {
    %c0_i32 = arith.constant 0 : i32
    %c0_i32_0 = arith.constant 0 : i32
    return %arg0, %c0_i32 : i32, i32
  }
  func.func @transform_2(%arg0: i32) -> (i32, i32) {
    %c0_i32 = arith.constant 0 : i32
    %c0_i32_0 = arith.constant 0 : i32
    %c0_i32_1 = arith.constant 0 : i32
    return %c0_i32, %c0_i32_0 : i32, i32
  }
  func.func @transform_3(%arg0: i32) -> (i32, i32) {
    %c0_i32 = arith.constant 0 : i32
    %c0_i32_0 = arith.constant 0 : i32
    %c0_i32_1 = arith.constant 0 : i32
    return %c0_i32, %c0_i32_0 : i32, i32
  }
  func.func @transform_4(%arg0: i32) -> (i32, i32) {
    %c0_i32 = arith.constant 0 : i32
    %c0_i32_0 = arith.constant 0 : i32
    %c0_i32_1 = arith.constant 0 : i32
    return %c0_i32, %c0_i32_0 : i32, i32
  }
  func.func @transform_5(%arg0: i32) -> (i32, i32) {
    %c0_i32 = arith.constant 0 : i32
    %c0_i32_0 = arith.constant 0 : i32
    %c0_i32_1 = arith.constant 0 : i32
    return %c0_i32, %c0_i32_0 : i32, i32
  }
  func.func @transform_6(%arg0: i32) -> (i32, i32) {
    %c0_i32 = arith.constant 0 : i32
    %c0_i32_0 = arith.constant 0 : i32
    %c0_i32_1 = arith.constant 0 : i32
    return %c0_i32, %c0_i32_0 : i32, i32
  }
  func.func @transform_7(%arg0: i32) -> (i32, i32) {
    %c0_i32 = arith.constant 0 : i32
    %c0_i32_0 = arith.constant 0 : i32
    %c0_i32_1 = arith.constant 0 : i32
    return %c0_i32, %c0_i32_0 : i32, i32
  }
  func.func @transform_8(%arg0: i32) -> (i32, i32) {
    %c0_i32 = arith.constant 0 : i32
    %c0_i32_0 = arith.constant 0 : i32
    %c0_i32_1 = arith.constant 0 : i32
    return %c0_i32, %c0_i32_0 : i32, i32
  }
  func.func @transform_9(%arg0: i32) -> (i32, i32) {
    %c0_i32 = arith.constant 0 : i32
    %c0_i32_0 = arith.constant 0 : i32
    %c0_i32_1 = arith.constant 0 : i32
    return %c0_i32, %c0_i32_0 : i32, i32
  }
  func.func @transform_10(%arg0: i32) -> (i32, i32) {
    %c0_i32 = arith.constant 0 : i32
    %c0_i32_0 = arith.constant 0 : i32
    %c0_i32_1 = arith.constant 0 : i32
    return %c0_i32, %c0_i32_0 : i32, i32
  }
  func.func @transform_11(%arg0: i32) -> (i32, i32) {
    %c0_i32 = arith.constant 0 : i32
    %c0_i32_0 = arith.constant 0 : i32
    %c0_i32_1 = arith.constant 0 : i32
    return %c0_i32, %c0_i32_0 : i32, i32
  }
  func.func @transform_12(%arg0: i32) -> (i32, i32) {
    %c0_i32 = arith.constant 0 : i32
    %c0_i32_0 = arith.constant 0 : i32
    %c0_i32_1 = arith.constant 0 : i32
    return %c0_i32, %c0_i32_0 : i32, i32
  }
  func.func @transform_13(%arg0: i32) -> (i32, i32) {
    %c0_i32 = arith.constant 0 : i32
    %c0_i32_0 = arith.constant 0 : i32
    %c0_i32_1 = arith.constant 0 : i32
    return %c0_i32, %c0_i32_0 : i32, i32
  }
  func.func @transform_14(%arg0: i32) -> (i32, i32) {
    %c0_i32 = arith.constant 0 : i32
    %c0_i32_0 = arith.constant 0 : i32
    %c0_i32_1 = arith.constant 0 : i32
    return %c0_i32, %c0_i32_0 : i32, i32
  }
  func.func @transform_15(%arg0: i32) -> (i32, i32) {
    %c0_i32 = arith.constant 0 : i32
    %c0_i32_0 = arith.constant 0 : i32
    %c0_i32_1 = arith.constant 0 : i32
    return %c0_i32, %c0_i32_0 : i32, i32
  }
  func.func @transform_16(%arg0: i32) -> (i32, i32) {
    %c0_i32 = arith.constant 0 : i32
    %c0_i32_0 = arith.constant 0 : i32
    %c0_i32_1 = arith.constant 0 : i32
    return %c0_i32, %c0_i32_0 : i32, i32
  }
  func.func @transform_17(%arg0: i32) -> (i32, i32) {
    %c0_i32 = arith.constant 0 : i32
    %c0_i32_0 = arith.constant 0 : i32
    %c0_i32_1 = arith.constant 0 : i32
    return %c0_i32, %c0_i32_0 : i32, i32
  }
  func.func @transform_18(%arg0: i32) -> (i32, i32) {
    %c0_i32 = arith.constant 0 : i32
    %c0_i32_0 = arith.constant 0 : i32
    return %arg0, %c0_i32 : i32, i32
  }
  func.func @transform_19(%arg0: i32) -> (i32, i32) {
    %c0_i32 = arith.constant 0 : i32
    %c0_i32_0 = arith.constant 0 : i32
    return %arg0, %c0_i32 : i32, i32
  }
}

</mosaic_0001>

<llo_original>
// kernel: _gsm_forward_impl.1
$region0: #{_gsm_forward_impl.1}
  #allocation0 [shape = 'u32[]', space=smem, size = 0x4, offset = 0x4, fixed_abs, tag = 'smem constant byte address 0x4 - core index']
  #allocation1 [shape = 'u32[144,128]{1,0:T(1,128)}', space=vmem, size = 0x12000, scoped, tag = 'internal scratch']
  %s0 = inlined_call_operand.vmem [shape: bf16[16,64], index: 0, kind: input, shape index: {}]
  %s1 = inlined_call_operand.vmem [shape: f32[16,128], index: 1, kind: input, shape index: {}]
  %s2 = inlined_call_operand.vmem [shape: bf16[64,256], index: 2, kind: input, shape index: {}]
  %s3 = inlined_call_operand.vmem [shape: f32[1,256], index: 3, kind: input, shape index: {}]
  %s4 = inlined_call_operand.hbm [shape: bf16[128,128], index: 4, kind: input, shape index: {}]
  %s5 = inlined_call_operand.vmem [shape: f32[1,128], index: 5, kind: input, shape index: {}]
  %s6 = inlined_call_operand.hbm [shape: bf16[128,256], index: 6, kind: input, shape index: {}]
  %s7 = inlined_call_operand.vmem [shape: f32[1,256], index: 7, kind: input, shape index: {}]
  %s8 = inlined_call_operand.hbm [shape: bf16[128,128], index: 8, kind: input, shape index: {}]
  %s9 = inlined_call_operand.vmem [shape: f32[1,128], index: 9, kind: input, shape index: {}]
  %s10 = inlined_call_operand.hbm [shape: bf16[128,128], index: 10, kind: input, shape index: {}]
  %s11 = inlined_call_operand.vmem [shape: f32[1,128], index: 11, kind: input, shape index: {}]
  %s12 = inlined_call_operand.hbm [shape: bf16[128,128], index: 12, kind: input, shape index: {}]
  %s13 = inlined_call_operand.vmem [shape: f32[1,128], index: 13, kind: input, shape index: {}]
  %s14 = inlined_call_operand.hbm [shape: bf16[128,128], index: 14, kind: input, shape index: {}]
  %s15 = inlined_call_operand.vmem [shape: f32[1,128], index: 15, kind: input, shape index: {}]
  %s16 = inlined_call_operand.hbm [shape: bf16[128,128], index: 16, kind: input, shape index: {}]
  %s17 = inlined_call_operand.vmem [shape: f32[1,128], index: 17, kind: input, shape index: {}]
  %s18 = inlined_call_operand.vmem [shape: f32[16,512], index: 18, kind: output, shape index: {0}]
  %s19 = inlined_call_operand.vmem [shape: f32[16,128], index: 19, kind: output, shape index: {1}]
  %20 = xla_tuple %s18, %s19
  %s21 = sld [smem:[#allocation0]]
  $region118: #{_gsm_forward_impl.1} parent=0
    _
  %s23 = ssub.s32 1, %s21
  %s24 = scalar_select 0, %s23, %s21
  $region1: #{_gsm_forward_impl.1} parent=0
    #allocation2 [shape = 'u8[32768]{0}', space=vmem, size = 0x8000, scoped, tag = 'input window, operand 4, single buffered']
    #allocation3 [shape = 's32[1]{0}', space=sflag, size = 0x4, scoped, tag = 'scoped memory for _gsm_forward_impl.1']
    #allocation4 [shape = 'u8[65536]{0}', space=vmem, size = 0x10000, scoped, tag = 'input window, operand 6, single buffered']
    #allocation5 [shape = 's32[1]{0}', space=sflag, size = 0x4, scoped, tag = 'scoped memory for _gsm_forward_impl.1']
    #allocation6 [shape = 'u8[32768]{0}', space=vmem, size = 0x8000, scoped, tag = 'input window, operand 8, single buffered']
    #allocation7 [shape = 'u8[32768]{0}', space=vmem, size = 0x8000, scoped, tag = 'input window, operand 10, single buffered']
    #allocation8 [shape = 's32[1]{0}', space=sflag, size = 0x4, scoped, tag = 'scoped memory for _gsm_forward_impl.1']
    #allocation9 [shape = 'u8[32768]{0}', space=vmem, size = 0x8000, scoped, tag = 'input window, operand 12, single buffered']
    #allocation10 [shape = 'u8[32768]{0}', space=vmem, size = 0x8000, scoped, tag = 'input window, operand 14, single buffered']
    #allocation11 [shape = 's32[1]{0}', space=sflag, size = 0x4, scoped, tag = 'scoped memory for _gsm_forward_impl.1']
    #allocation12 [shape = 'u8[32768]{0}', space=vmem, size = 0x8000, scoped, tag = 'input window, operand 16, single buffered']
    %25 = vsyncpa [#allocation3], 0
    %26 = vsyncpa [#allocation5], 0
    %27 = vsyncpa [#allocation8], 0
    %28 = vsyncpa [#allocation11], 0
    // Predicated region
    $region2: #{_gsm_forward_impl.1} parent=1 // pred_check
      _
    $region3: #{_gsm_forward_impl.1} parent=1 // pred_check_branch
      %30 = sbr.rel (0) target = $region5
    $region4: #{_gsm_forward_impl.1} parent=1 // pred_region
      _
    $region5: #{_gsm_forward_impl.1} parent=1 // pred_fallthru
      _
    // Predicated region
    $region6: #{_gsm_forward_impl.1} parent=1 // pred_check
      _
    $region7: #{_gsm_forward_impl.1} parent=1 // pred_check_branch
      %32 = sbr.rel (0) target = $region9
    $region8: #{_gsm_forward_impl.1} parent=1 // pred_region
      _
    $region9: #{_gsm_forward_impl.1} parent=1 // pred_fallthru
      _
    // Predicated region
    $region10: #{_gsm_forward_impl.1} parent=1 // pred_check
      _
    $region11: #{_gsm_forward_impl.1} parent=1 // pred_check_branch
      %34 = sbr.rel (0) target = $region13
    $region12: #{_gsm_forward_impl.1} parent=1 // pred_region
      _
    $region13: #{_gsm_forward_impl.1} parent=1 // pred_fallthru
      _
    // Predicated region
    $region14: #{_gsm_forward_impl.1} parent=1 // pred_check
      _
    $region15: #{_gsm_forward_impl.1} parent=1 // pred_check_branch
      %36 = sbr.rel (0) target = $region17
    $region16: #{_gsm_forward_impl.1} parent=1 // pred_region
      _
    $region17: #{_gsm_forward_impl.1} parent=1 // pred_fallthru
      _
    // Predicated region
    $region18: #{_gsm_forward_impl.1} parent=1 // pred_check
      _
    $region19: #{_gsm_forward_impl.1} parent=1 // pred_check_branch
      %38 = sbr.rel (0) target = $region21
    $region20: #{_gsm_forward_impl.1} parent=1 // pred_region
      %s40 = ssub.s32 1024, 1024
      %41 = vsyncadd [#allocation3], %s40
      %s42 = sshll.u32 [#allocation2], 4
      %s43 = int_to_ptr.vmem [resolvable:$true] %s42
      %48 = dma.hbm_to_vmem [thread:$0]  %s4, 1024, %s43, [#allocation3], 64, 64, 4
    $region21: #{_gsm_forward_impl.1} parent=1 // pred_fallthru
      _
    // Predicated region
    $region22: #{_gsm_forward_impl.1} parent=1 // pred_check
      _
    $region23: #{_gsm_forward_impl.1} parent=1 // pred_check_branch
      %50 = sbr.rel (0) target = $region25
    $region24: #{_gsm_forward_impl.1} parent=1 // pred_region
      _
    $region25: #{_gsm_forward_impl.1} parent=1 // pred_fallthru
      _
    // Predicated region
    $region26: #{_gsm_forward_impl.1} parent=1 // pred_check
      _
    $region27: #{_gsm_forward_impl.1} parent=1 // pred_check_branch
      %52 = sbr.rel (0) target = $region29
    $region28: #{_gsm_forward_impl.1} parent=1 // pred_region
      %s54 = ssub.s32 2048, 2048
      %55 = vsyncadd [#allocation5], %s54
      %s56 = sshll.u32 [#allocation4], 4
      %s57 = int_to_ptr.vmem [resolvable:$true] %s56
      %62 = dma.hbm_to_vmem [thread:$0]  %s6, 2048, %s57, [#allocation5], 128, 128, 8
    $region29: #{_gsm_forward_impl.1} parent=1 // pred_fallthru
      _
    // Predicated region
    $region30: #{_gsm_forward_impl.1} parent=1 // pred_check
      _
    $region31: #{_gsm_forward_impl.1} parent=1 // pred_check_branch
      %64 = sbr.rel (0) target = $region33
    $region32: #{_gsm_forward_impl.1} parent=1 // pred_region
      _
    $region33: #{_gsm_forward_impl.1} parent=1 // pred_fallthru
      _
    // Predicated region
    $region34: #{_gsm_forward_impl.1} parent=1 // pred_check
      _
    $region35: #{_gsm_forward_impl.1} parent=1 // pred_check_branch
      %66 = sbr.rel (0) target = $region37
    $region36: #{_gsm_forward_impl.1} parent=1 // pred_region
      %s68 = ssub.s32 1024, 1024
      %69 = vsyncadd [#allocation5], %s68
      %s70 = sshll.u32 [#allocation6], 4
      %s71 = int_to_ptr.vmem [resolvable:$true] %s70
      %76 = dma.hbm_to_vmem [thread:$0]  %s8, 1024, %s71, [#allocation5], 64, 64, 4
    $region37: #{_gsm_forward_impl.1} parent=1 // pred_fallthru
      _
    // Predicated region
    $region38: #{_gsm_forward_impl.1} parent=1 // pred_check
      _
    $region39: #{_gsm_forward_impl.1} parent=1 // pred_check_branch
      %78 = sbr.rel (0) target = $region41
    $region40: #{_gsm_forward_impl.1} parent=1 // pred_region
      _
    $region41: #{_gsm_forward_impl.1} parent=1 // pred_fallthru
      _
    // Predicated region
    $region42: #{_gsm_forward_impl.1} parent=1 // pred_check
      _
    $region43: #{_gsm_forward_impl.1} parent=1 // pred_check_branch
      %80 = sbr.rel (0) target = $region45
    $region44: #{_gsm_forward_impl.1} parent=1 // pred_region
      %s82 = ssub.s32 1024, 1024
      %83 = vsyncadd [#allocation8], %s82
      %s84 = sshll.u32 [#allocation7], 4
      %s85 = int_to_ptr.vmem [resolvable:$true] %s84
      %90 = dma.hbm_to_vmem [thread:$0]  %s10, 1024, %s85, [#allocation8], 64, 64, 4
    $region45: #{_gsm_forward_impl.1} parent=1 // pred_fallthru
      _
    // Predicated region
    $region46: #{_gsm_forward_impl.1} parent=1 // pred_check
      _
    $region47: #{_gsm_forward_impl.1} parent=1 // pred_check_branch
      %92 = sbr.rel (0) target = $region49
    $region48: #{_gsm_forward_impl.1} parent=1 // pred_region
      _
    $region49: #{_gsm_forward_impl.1} parent=1 // pred_fallthru
      _
    // Predicated region
    $region50: #{_gsm_forward_impl.1} parent=1 // pred_check
      _
    $region51: #{_gsm_forward_impl.1} parent=1 // pred_check_branch
      %94 = sbr.rel (0) target = $region53
    $region52: #{_gsm_forward_impl.1} parent=1 // pred_region
      %s96 = ssub.s32 1024, 1024
      %97 = vsyncadd [#allocation8], %s96
      %s98 = sshll.u32 [#allocation9], 4
      %s99 = int_to_ptr.vmem [resolvable:$true] %s98
      %104 = dma.hbm_to_vmem [thread:$0]  %s12, 1024, %s99, [#allocation8], 64, 64, 4
    $region53: #{_gsm_forward_impl.1} parent=1 // pred_fallthru
      _
    // Predicated region
    $region54: #{_gsm_forward_impl.1} parent=1 // pred_check
      _
    $region55: #{_gsm_forward_impl.1} parent=1 // pred_check_branch
      %106 = sbr.rel (0) target = $region57
    $region56: #{_gsm_forward_impl.1} parent=1 // pred_region
      _
    $region57: #{_gsm_forward_impl.1} parent=1 // pred_fallthru
      _
    // Predicated region
    $region58: #{_gsm_forward_impl.1} parent=1 // pred_check
      _
    $region59: #{_gsm_forward_impl.1} parent=1 // pred_check_branch
      %108 = sbr.rel (0) target = $region61
    $region60: #{_gsm_forward_impl.1} parent=1 // pred_region
      %s110 = ssub.s32 1024, 1024
      %111 = vsyncadd [#allocation11], %s110
      %s112 = sshll.u32 [#allocation10], 4
      %s113 = int_to_ptr.vmem [resolvable:$true] %s112
      %118 = dma.hbm_to_vmem [thread:$0]  %s14, 1024, %s113, [#allocation11], 64, 64, 4
    $region61: #{_gsm_forward_impl.1} parent=1 // pred_fallthru
      _
    // Predicated region
    $region62: #{_gsm_forward_impl.1} parent=1 // pred_check
      _
    $region63: #{_gsm_forward_impl.1} parent=1 // pred_check_branch
      %120 = sbr.rel (0) target = $region65
    $region64: #{_gsm_forward_impl.1} parent=1 // pred_region
      _
    $region65: #{_gsm_forward_impl.1} parent=1 // pred_fallthru
      _
    // Predicated region
    $region66: #{_gsm_forward_impl.1} parent=1 // pred_check
      _
    $region67: #{_gsm_forward_impl.1} parent=1 // pred_check_branch
      %122 = sbr.rel (0) target = $region69
    $region68: #{_gsm_forward_impl.1} parent=1 // pred_region
      %s124 = ssub.s32 1024, 1024
      %125 = vsyncadd [#allocation11], %s124
      %s126 = sshll.u32 [#allocation12], 4
      %s127 = int_to_ptr.vmem [resolvable:$true] %s126
      %132 = dma.hbm_to_vmem [thread:$0]  %s16, 1024, %s127, [#allocation11], 64, 64, 4
    $region69: #{_gsm_forward_impl.1} parent=1 // pred_fallthru
      _
    // Predicated region
    $region70: #{_gsm_forward_impl.1} parent=1 // pred_check
      _
    $region71: #{_gsm_forward_impl.1} parent=1 // pred_check_branch
      %134 = sbr.rel (0) target = $region73
    $region72: #{_gsm_forward_impl.1} parent=1 // pred_region
      _
    $region73: #{_gsm_forward_impl.1} parent=1 // pred_fallthru
      _
    // Predicated region
    $region74: #{_gsm_forward_impl.1} parent=1 // pred_check
      _
    $region75: #{_gsm_forward_impl.1} parent=1 // pred_check_branch
      %136 = sbr.rel (0) target = $region77
    $region76: #{_gsm_forward_impl.1} parent=1 // pred_region
      %137 = dma.done [#allocation3], 1024
    $region77: #{_gsm_forward_impl.1} parent=1 // pred_fallthru
      _
    // Predicated region
    $region78: #{_gsm_forward_impl.1} parent=1 // pred_check
      _
    $region79: #{_gsm_forward_impl.1} parent=1 // pred_check_branch
      %139 = sbr.rel (0) target = $region81
    $region80: #{_gsm_forward_impl.1} parent=1 // pred_region
      %140 = dma.done [#allocation5], 2048
    $region81: #{_gsm_forward_impl.1} parent=1 // pred_fallthru
      _
    // Predicated region
    $region82: #{_gsm_forward_impl.1} parent=1 // pred_check
      _
    $region83: #{_gsm_forward_impl.1} parent=1 // pred_check_branch
      %142 = sbr.rel (0) target = $region85
    $region84: #{_gsm_forward_impl.1} parent=1 // pred_region
      %143 = dma.done [#allocation5], 1024
    $region85: #{_gsm_forward_impl.1} parent=1 // pred_fallthru
      _
    // Predicated region
    $region86: #{_gsm_forward_impl.1} parent=1 // pred_check
      _
    $region87: #{_gsm_forward_impl.1} parent=1 // pred_check_branch
      %145 = sbr.rel (0) target = $region89
    $region88: #{_gsm_forward_impl.1} parent=1 // pred_region
      %146 = dma.done [#allocation8], 1024
    $region89: #{_gsm_forward_impl.1} parent=1 // pred_fallthru
      _
    // Predicated region
    $region90: #{_gsm_forward_impl.1} parent=1 // pred_check
      _
    $region91: #{_gsm_forward_impl.1} parent=1 // pred_check_branch
      %148 = sbr.rel (0) target = $region93
    $region92: #{_gsm_forward_impl.1} parent=1 // pred_region
      %149 = dma.done [#allocation8], 1024
    $region93: #{_gsm_forward_impl.1} parent=1 // pred_fallthru
      _
    // Predicated region
    $region94: #{_gsm_forward_impl.1} parent=1 // pred_check
      _
    $region95: #{_gsm_forward_impl.1} parent=1 // pred_check_branch
      %151 = sbr.rel (0) target = $region97
    $region96: #{_gsm_forward_impl.1} parent=1 // pred_region
      %152 = dma.done [#allocation11], 1024
    $region97: #{_gsm_forward_impl.1} parent=1 // pred_fallthru
      _
    // Predicated region
    $region98: #{_gsm_forward_impl.1} parent=1 // pred_check
      _
    $region99: #{_gsm_forward_impl.1} parent=1 // pred_check_branch
      %154 = sbr.rel (0) target = $region101
    $region100: #{_gsm_forward_impl.1} parent=1 // pred_region
      %155 = dma.done [#allocation11], 1024
    $region101: #{_gsm_forward_impl.1} parent=1 // pred_fallthru
      _
    %v157 = vld [vmem:[%s0] sm:$0xf]
    %v158 = vld [vmem:[%s0 + $0x4] sm:$0xf]
    %v159 = vld [vmem:[%s2] sm:$0xff]
    %v160 = vld [vmem:[%s2 + $0x8] sm:$0xff]
    %v161 = vld [vmem:[%s2 + $0x10] sm:$0xff]
    %v162 = vld [vmem:[%s2 + $0x18] sm:$0xff]
    %v163 = vld [vmem:[%s2 + $0x20] sm:$0xff]
    %v164 = vld [vmem:[%s2 + $0x28] sm:$0xff]
    %v165 = vld [vmem:[%s2 + $0x30] sm:$0xff]
    %v166 = vld [vmem:[%s2 + $0x38] sm:$0xff]
    %v167 = vld [vmem:[%s3] sm:$0x3]
    %v169 = vlaneseq
    %v170 = vshrl.u32 %v169, 7
    %v171 = vsub.s32 0, %v170
    %v172 = vrot.slane %v167, %v171
    %v173 = vlaneseq
    %v174 = vshrl.u32 %v173, 7
    %v175 = vsub.s32 1, %v174
    %v176 = vrot.slane %v167, %v175
    %v181 = vunpack.c.l.b16 %v157
    %v182 = vunpack.c.l.b16 %v158
    %v183 = vpack.c.b16 %v182, %v181
    %v192 = vunpack.c.l.b16 %v159
    %v193 = vunpack.c.h.b16 %v159
    %v194 = vunpack.c.l.b16 %v160
    %v195 = vunpack.c.h.b16 %v160
    %v196 = vunpack.c.l.b16 %v161
    %v197 = vunpack.c.h.b16 %v161
    %v198 = vunpack.c.l.b16 %v162
    %v199 = vunpack.c.h.b16 %v162
    %v200 = vunpack.c.l.b16 %v163
    %v201 = vunpack.c.h.b16 %v163
    %v202 = vunpack.c.l.b16 %v164
    %v203 = vunpack.c.h.b16 %v164
    %v204 = vunpack.c.l.b16 %v165
    %v205 = vunpack.c.h.b16 %v165
    %v206 = vunpack.c.l.b16 %v166
    %v207 = vunpack.c.h.b16 %v166
    %v208 = vpack.c.b16 %v194, %v192
    %v209 = vpack.c.b16 %v195, %v193
    %v210 = vpack.c.b16 %v198, %v196
    %v211 = vpack.c.b16 %v199, %v197
    %v212 = vpack.c.b16 %v202, %v200
    %v213 = vpack.c.b16 %v203, %v201
    %v214 = vpack.c.b16 %v206, %v204
    %v215 = vpack.c.b16 %v207, %v205
    %vm224 = vcmask 523264
    %v226 = vsel %vm224, %v183, 0
    %228 = vmatprep.subr.bf16.mxu0 %v209
    %229 = vmatpush1.bf16.msra.mxu0 %v208
    %230 = vmatprep.subr.bf16.mxu0 %v211
    %231 = vmatpush1.bf16.msra.mxu0 %v210
    %232 = vmatprep.subr.bf16.mxu0 %v213
    %233 = vmatpush1.bf16.msra.mxu0 %v212
    %234 = vmatprep.subr.bf16.mxu0 %v215
    %235 = vmatpush1.bf16.msra.mxu0 %v214
    %236 = vmatprep.subr.bf16.mxu0 0
    %237 = vmatpush1.bf16.msra.mxu0 0
    %238 = vmatprep.subr.bf16.mxu0 0
    %239 = vmatpush1.bf16.msra.mxu0 0
    %240 = vmatprep.subr.bf16.mxu0 0
    %241 = vmatpush1.bf16.msra.mxu0 0
    %242 = vmatprep.subr.bf16.mxu0 0
    %243 = vmatpush1.bf16.msra.mxu0 0
    %244 = vmatprep.subr.bf16.mxu0 0
    %245 = vmatpush1.bf16.msra.mxu0 0
    %246 = vmatprep.subr.bf16.mxu0 0
    %247 = vmatpush1.bf16.msra.mxu0 0
    %248 = vmatprep.subr.bf16.mxu0 0
    %249 = vmatpush1.bf16.msra.mxu0 0
    %250 = vmatprep.subr.bf16.mxu0 0
    %251 = vmatpush1.bf16.msra.mxu0 0
    %252 = vmatprep.subr.bf16.mxu0 0
    %253 = vmatpush1.bf16.msra.mxu0 0
    %254 = vmatprep.subr.bf16.mxu0 0
    %255 = vmatpush1.bf16.msra.mxu0 0
    %256 = vmatprep.subr.bf16.mxu0 0
    %257 = vmatpush1.bf16.msra.mxu0 0
    %258 = vmatprep.subr.bf16.mxu0 0
    %259 = vmatpush1.bf16.msra.mxu0 0
    %260 = vmatprep.mubr.bf16.mxu0 0
    %261 = vmatmul.mubr.bf16.gmra.mrb[0].mxu0 %v226
    %v262 = vpop.f32.mrb[0].mxu0
    %v263 = vadd.f32 %v172, %v262
    %v264 = vpop.f32.mrb[0].mxu0
    %v265 = vadd.f32 %v176, %v264
    %v266 = vpop.f32.mrb[0].mxu0
    %v267 = vadd.f32 %v172, %v266
    %v268 = vpop.f32.mrb[0].mxu0
    %v269 = vadd.f32 %v176, %v268
    %270 = vdwg.mxu0
    %v271 = vmax.f32 %v263, 0.0
    %v272 = vmax.f32 %v267, 0.0
    %v273 = vpack.c.bf16 %v272, %v271
    %v274 = vld [vmem:[#allocation2] sm:$0xf]
    %v275 = vld [vmem:[#allocation2 + $0x4] sm:$0xf]
    %v276 = vld [vmem:[#allocation2 + $0x8] sm:$0xf]
    %v277 = vld [vmem:[#allocation2 + $0xc] sm:$0xf]
    %v278 = vld [vmem:[#allocation2 + $0x10] sm:$0xf]
    %v279 = vld [vmem:[#allocation2 + $0x14] sm:$0xf]
    %v280 = vld [vmem:[#allocation2 + $0x18] sm:$0xf]
    %v281 = vld [vmem:[#allocation2 + $0x1c] sm:$0xf]
    %v282 = vld [vmem:[#allocation2 + $0x20] sm:$0xf]
    %v283 = vld [vmem:[#allocation2 + $0x24] sm:$0xf]
    %v284 = vld [vmem:[#allocation2 + $0x28] sm:$0xf]
    %v285 = vld [vmem:[#allocation2 + $0x2c] sm:$0xf]
    %v286 = vld [vmem:[#allocation2 + $0x30] sm:$0xf]
    %v287 = vld [vmem:[#allocation2 + $0x34] sm:$0xf]
    %v288 = vld [vmem:[#allocation2 + $0x38] sm:$0xf]
    %v289 = vld [vmem:[#allocation2 + $0x3c] sm:$0xf]
    %v290 = vld [vmem:[%s5] sm:$0x1]
    %v292 = vlaneseq
    %v293 = vshrl.u32 %v292, 7
    %v294 = vsub.s32 0, %v293
    %v295 = vrot.slane %v290, %v294
    %v313 = vunpack.c.l.b16 %v274
    %v314 = vunpack.c.l.b16 %v275
    %v315 = vunpack.c.l.b16 %v276
    %v316 = vunpack.c.l.b16 %v277
    %v317 = vunpack.c.l.b16 %v278
    %v318 = vunpack.c.l.b16 %v279
    %v319 = vunpack.c.l.b16 %v280
    %v320 = vunpack.c.l.b16 %v281
    %v321 = vunpack.c.l.b16 %v282
    %v322 = vunpack.c.l.b16 %v283
    %v323 = vunpack.c.l.b16 %v284
    %v324 = vunpack.c.l.b16 %v285
    %v325 = vunpack.c.l.b16 %v286
    %v326 = vunpack.c.l.b16 %v287
    %v327 = vunpack.c.l.b16 %v288
    %v328 = vunpack.c.l.b16 %v289
    %v329 = vpack.c.b16 %v314, %v313
    %v330 = vpack.c.b16 %v316, %v315
    %v331 = vpack.c.b16 %v318, %v317
    %v332 = vpack.c.b16 %v320, %v319
    %v333 = vpack.c.b16 %v322, %v321
    %v334 = vpack.c.b16 %v324, %v323
    %v335 = vpack.c.b16 %v326, %v325
    %v336 = vpack.c.b16 %v328, %v327
    %345 = vmatprep.subr.bf16.mxu0 0
    %346 = vmatpush1.bf16.msra.mxu0 %v329
    %347 = vmatprep.subr.bf16.mxu0 0
    %348 = vmatpush1.bf16.msra.mxu0 %v330
    %349 = vmatprep.subr.bf16.mxu0 0
    %350 = vmatpush1.bf16.msra.mxu0 %v331
    %351 = vmatprep.subr.bf16.mxu0 0
    %352 = vmatpush1.bf16.msra.mxu0 %v332
    %353 = vmatprep.subr.bf16.mxu0 0
    %354 = vmatpush1.bf16.msra.mxu0 %v333
    %355 = vmatprep.subr.bf16.mxu0 0
    %356 = vmatpush1.bf16.msra.mxu0 %v334
    %357 = vmatprep.subr.bf16.mxu0 0
    %358 = vmatpush1.bf16.msra.mxu0 %v335
    %359 = vmatprep.subr.bf16.mxu0 0
    %360 = vmatpush1.bf16.msra.mxu0 %v336
    %361 = vmatprep.subr.bf16.mxu0 0
    %362 = vmatpush1.bf16.msra.mxu0 0
    %363 = vmatprep.subr.bf16.mxu0 0
    %364 = vmatpush1.bf16.msra.mxu0 0
    %365 = vmatprep.subr.bf16.mxu0 0
    %366 = vmatpush1.bf16.msra.mxu0 0
    %367 = vmatprep.subr.bf16.mxu0 0
    %368 = vmatpush1.bf16.msra.mxu0 0
    %369 = vmatprep.subr.bf16.mxu0 0
    %370 = vmatpush1.bf16.msra.mxu0 0
    %371 = vmatprep.subr.bf16.mxu0 0
    %372 = vmatpush1.bf16.msra.mxu0 0
    %373 = vmatprep.subr.bf16.mxu0 0
    %374 = vmatpush1.bf16.msra.mxu0 0
    %375 = vmatprep.subr.bf16.mxu0 0
    %376 = vmatpush1.bf16.msra.mxu0 0
    %377 = vmatprep.mubr.bf16.mxu0 0
    %378 = vmatmul.mubr.bf16.gmra.mrb[0].mxu0 %v273
    %v379 = vpop.f32.mrb[0].mxu0
    %v380 = vadd.f32 %v295, %v379
    %v381 = vpop.f32.mrb[0].mxu0
    %v382 = vpop.f32.mrb[0].mxu0
    %v383 = vadd.f32 %v295, %v382
    %v384 = vpop.f32.mrb[0].mxu0
    %385 = vdwg.mxu0
    %v386 = vmax.f32 %v380, 0.0
    %v387 = vmax.f32 %v383, 0.0
    %v388 = vadd.f32 %v386, %v265
    %v389 = vadd.f32 %v387, %v269
    %v390 = vpack.c.bf16 %v389, %v388
    %v391 = vld [vmem:[#allocation4] sm:$0xff]
    %v392 = vld [vmem:[#allocation4 + $0x8] sm:$0xff]
    %v393 = vld [vmem:[#allocation4 + $0x10] sm:$0xff]
    %v394 = vld [vmem:[#allocation4 + $0x18] sm:$0xff]
    %v395 = vld [vmem:[#allocation4 + $0x20] sm:$0xff]
    %v396 = vld [vmem:[#allocation4 + $0x28] sm:$0xff]
    %v397 = vld [vmem:[#allocation4 + $0x30] sm:$0xff]
    %v398 = vld [vmem:[#allocation4 + $0x38] sm:$0xff]
    %v399 = vld [vmem:[#allocation4 + $0x40] sm:$0xff]
    %v400 = vld [vmem:[#allocation4 + $0x48] sm:$0xff]
    %v401 = vld [vmem:[#allocation4 + $0x50] sm:$0xff]
    %v402 = vld [vmem:[#allocation4 + $0x58] sm:$0xff]
    %v403 = vld [vmem:[#allocation4 + $0x60] sm:$0xff]
    %v404 = vld [vmem:[#allocation4 + $0x68] sm:$0xff]
    %v405 = vld [vmem:[#allocation4 + $0x70] sm:$0xff]
    %v406 = vld [vmem:[#allocation4 + $0x78] sm:$0xff]
    %v407 = vld [vmem:[%s7] sm:$0x3]
    %v409 = vlaneseq
    %v410 = vshrl.u32 %v409, 7
    %v411 = vsub.s32 0, %v410
    %v412 = vrot.slane %v407, %v411
    %v413 = vlaneseq
    %v414 = vshrl.u32 %v413, 7
    %v415 = vsub.s32 1, %v414
    %v416 = vrot.slane %v407, %v415
    %v435 = vunpack.c.l.b16 %v391
    %v436 = vunpack.c.h.b16 %v391
    %v437 = vunpack.c.l.b16 %v392
    %v438 = vunpack.c.h.b16 %v392
    %v439 = vunpack.c.l.b16 %v393
    %v440 = vunpack.c.h.b16 %v393
    %v441 = vunpack.c.l.b16 %v394
    %v442 = vunpack.c.h.b16 %v394
    %v443 = vunpack.c.l.b16 %v395
    %v444 = vunpack.c.h.b16 %v395
    %v445 = vunpack.c.l.b16 %v396
    %v446 = vunpack.c.h.b16 %v396
    %v447 = vunpack.c.l.b16 %v397
    %v448 = vunpack.c.h.b16 %v397
    %v449 = vunpack.c.l.b16 %v398
    %v450 = vunpack.c.h.b16 %v398
    %v451 = vunpack.c.l.b16 %v399
    %v452 = vunpack.c.h.b16 %v399
    %v453 = vunpack.c.l.b16 %v400
    %v454 = vunpack.c.h.b16 %v400
    %v455 = vunpack.c.l.b16 %v401
    %v456 = vunpack.c.h.b16 %v401
    %v457 = vunpack.c.l.b16 %v402
    %v458 = vunpack.c.h.b16 %v402
    %v459 = vunpack.c.l.b16 %v403
    %v460 = vunpack.c.h.b16 %v403
    %v461 = vunpack.c.l.b16 %v404
    %v462 = vunpack.c.h.b16 %v404
    %v463 = vunpack.c.l.b16 %v405
    %v464 = vunpack.c.h.b16 %v405
    %v465 = vunpack.c.l.b16 %v406
    %v466 = vunpack.c.h.b16 %v406
    %v467 = vpack.c.b16 %v437, %v435
    %v468 = vpack.c.b16 %v438, %v436
    %v469 = vpack.c.b16 %v441, %v439
    %v470 = vpack.c.b16 %v442, %v440
    %v471 = vpack.c.b16 %v445, %v443
    %v472 = vpack.c.b16 %v446, %v444
    %v473 = vpack.c.b16 %v449, %v447
    %v474 = vpack.c.b16 %v450, %v448
    %v475 = vpack.c.b16 %v453, %v451
    %v476 = vpack.c.b16 %v454, %v452
    %v477 = vpack.c.b16 %v457, %v455
    %v478 = vpack.c.b16 %v458, %v456
    %v479 = vpack.c.b16 %v461, %v459
    %v480 = vpack.c.b16 %v462, %v460
    %v481 = vpack.c.b16 %v465, %v463
    %v482 = vpack.c.b16 %v466, %v464
    %499 = vmatprep.subr.bf16.mxu0 %v468
    %500 = vmatpush1.bf16.msra.mxu0 %v467
    %501 = vmatprep.subr.bf16.mxu0 %v470
    %502 = vmatpush1.bf16.msra.mxu0 %v469
    %503 = vmatprep.subr.bf16.mxu0 %v472
    %504 = vmatpush1.bf16.msra.mxu0 %v471
    %505 = vmatprep.subr.bf16.mxu0 %v474
    %506 = vmatpush1.bf16.msra.mxu0 %v473
    %507 = vmatprep.subr.bf16.mxu0 %v476
    %508 = vmatpush1.bf16.msra.mxu0 %v475
    %509 = vmatprep.subr.bf16.mxu0 %v478
    %510 = vmatpush1.bf16.msra.mxu0 %v477
    %511 = vmatprep.subr.bf16.mxu0 %v480
    %512 = vmatpush1.bf16.msra.mxu0 %v479
    %513 = vmatprep.subr.bf16.mxu0 %v482
    %514 = vmatpush1.bf16.msra.mxu0 %v481
    %515 = vmatprep.subr.bf16.mxu0 0
    %516 = vmatpush1.bf16.msra.mxu0 0
    %517 = vmatprep.subr.bf16.mxu0 0
    %518 = vmatpush1.bf16.msra.mxu0 0
    %519 = vmatprep.subr.bf16.mxu0 0
    %520 = vmatpush1.bf16.msra.mxu0 0
    %521 = vmatprep.subr.bf16.mxu0 0
    %522 = vmatpush1.bf16.msra.mxu0 0
    %523 = vmatprep.subr.bf16.mxu0 0
    %524 = vmatpush1.bf16.msra.mxu0 0
    %525 = vmatprep.subr.bf16.mxu0 0
    %526 = vmatpush1.bf16.msra.mxu0 0
    %527 = vmatprep.subr.bf16.mxu0 0
    %528 = vmatpush1.bf16.msra.mxu0 0
    %529 = vmatprep.subr.bf16.mxu0 0
    %530 = vmatpush1.bf16.msra.mxu0 0
    %531 = vmatprep.mubr.bf16.mxu0 0
    %532 = vmatmul.mubr.bf16.gmra.mrb[0].mxu0 %v390
    %v533 = vpop.f32.mrb[0].mxu0
    %v534 = vadd.f32 %v412, %v533
    %v535 = vpop.f32.mrb[0].mxu0
    %v536 = vadd.f32 %v416, %v535
    %v537 = vpop.f32.mrb[0].mxu0
    %v538 = vadd.f32 %v412, %v537
    %v539 = vpop.f32.mrb[0].mxu0
    %v540 = vadd.f32 %v416, %v539
    %541 = vdwg.mxu0
    %v542 = vmul.f32 %v536, 0.5
    %v543 = vmul.f32 %v540, 0.5
    %v544 = vmul.f32 %v542, 1.442695
    %v545 = vpow.pop %v544
    %v546 = vmul.f32 %v543, 1.442695
    %v547 = vpow.pop %v546
    %v548 = vld [vmem:[%s1] sm:$0xff]
    %v549 = vld [vmem:[%s1 + $0x8] sm:$0xff]
    %v550 = vmul.f32 %v548, %v545
    %v551 = vmul.f32 %v549, %v547
    %v552 = vadd.f32 %v550, %v534
    %v553 = vadd.f32 %v551, %v538
    %v554 = vpack.c.bf16 %v553, %v552
    %v555 = vld [vmem:[#allocation6] sm:$0xf]
    %v556 = vld [vmem:[#allocation6 + $0x4] sm:$0xf]
    %v557 = vld [vmem:[#allocation6 + $0x8] sm:$0xf]
    %v558 = vld [vmem:[#allocation6 + $0xc] sm:$0xf]
    %v559 = vld [vmem:[#allocation6 + $0x10] sm:$0xf]
    %v560 = vld [vmem:[#allocation6 + $0x14] sm:$0xf]
    %v561 = vld [vmem:[#allocation6 + $0x18] sm:$0xf]
    %v562 = vld [vmem:[#allocation6 + $0x1c] sm:$0xf]
    %v563 = vld [vmem:[#allocation6 + $0x20] sm:$0xf]
    %v564 = vld [vmem:[#allocation6 + $0x24] sm:$0xf]
    %v565 = vld [vmem:[#allocation6 + $0x28] sm:$0xf]
    %v566 = vld [vmem:[#allocation6 + $0x2c] sm:$0xf]
    %v567 = vld [vmem:[#allocation6 + $0x30] sm:$0xf]
    %v568 = vld [vmem:[#allocation6 + $0x34] sm:$0xf]
    %v569 = vld [vmem:[#allocation6 + $0x38] sm:$0xf]
    %v570 = vld [vmem:[#allocation6 + $0x3c] sm:$0xf]
    %v571 = vld [vmem:[%s9] sm:$0x1]
    %v573 = vlaneseq
    %v574 = vshrl.u32 %v573, 7
    %v575 = vsub.s32 0, %v574
    %v576 = vrot.slane %v571, %v575
    %v594 = vunpack.c.l.b16 %v555
    %v595 = vunpack.c.l.b16 %v556
    %v596 = vunpack.c.l.b16 %v557
    %v597 = vunpack.c.l.b16 %v558
    %v598 = vunpack.c.l.b16 %v559
    %v599 = vunpack.c.l.b16 %v560
    %v600 = vunpack.c.l.b16 %v561
    %v601 = vunpack.c.l.b16 %v562
    %v602 = vunpack.c.l.b16 %v563
    %v603 = vunpack.c.l.b16 %v564
    %v604 = vunpack.c.l.b16 %v565
    %v605 = vunpack.c.l.b16 %v566
    %v606 = vunpack.c.l.b16 %v567
    %v607 = vunpack.c.l.b16 %v568
    %v608 = vunpack.c.l.b16 %v569
    %v609 = vunpack.c.l.b16 %v570
    %v610 = vpack.c.b16 %v595, %v594
    %v611 = vpack.c.b16 %v597, %v596
    %v612 = vpack.c.b16 %v599, %v598
    %v613 = vpack.c.b16 %v601, %v600
    %v614 = vpack.c.b16 %v603, %v602
    %v615 = vpack.c.b16 %v605, %v604
    %v616 = vpack.c.b16 %v607, %v606
    %v617 = vpack.c.b16 %v609, %v608
    %626 = vmatprep.subr.bf16.mxu0 0
    %627 = vmatpush1.bf16.msra.mxu0 %v610
    %628 = vmatprep.subr.bf16.mxu0 0
    %629 = vmatpush1.bf16.msra.mxu0 %v611
    %630 = vmatprep.subr.bf16.mxu0 0
    %631 = vmatpush1.bf16.msra.mxu0 %v612
    %632 = vmatprep.subr.bf16.mxu0 0
    %633 = vmatpush1.bf16.msra.mxu0 %v613
    %634 = vmatprep.subr.bf16.mxu0 0
    %635 = vmatpush1.bf16.msra.mxu0 %v614
    %636 = vmatprep.subr.bf16.mxu0 0
    %637 = vmatpush1.bf16.msra.mxu0 %v615
    %638 = vmatprep.subr.bf16.mxu0 0
    %639 = vmatpush1.bf16.msra.mxu0 %v616
    %640 = vmatprep.subr.bf16.mxu0 0
    %641 = vmatpush1.bf16.msra.mxu0 %v617
    %642 = vmatprep.subr.bf16.mxu0 0
    %643 = vmatpush1.bf16.msra.mxu0 0
    %644 = vmatprep.subr.bf16.mxu0 0
    %645 = vmatpush1.bf16.msra.mxu0 0
    %646 = vmatprep.subr.bf16.mxu0 0
    %647 = vmatpush1.bf16.msra.mxu0 0
    %648 = vmatprep.subr.bf16.mxu0 0
    %649 = vmatpush1.bf16.msra.mxu0 0
    %650 = vmatprep.subr.bf16.mxu0 0
    %651 = vmatpush1.bf16.msra.mxu0 0
    %652 = vmatprep.subr.bf16.mxu0 0
    %653 = vmatpush1.bf16.msra.mxu0 0
    %654 = vmatprep.subr.bf16.mxu0 0
    %655 = vmatpush1.bf16.msra.mxu0 0
    %656 = vmatprep.subr.bf16.mxu0 0
    %657 = vmatpush1.bf16.msra.mxu0 0
    %658 = vmatprep.mubr.bf16.mxu0 0
    %659 = vmatmul.mubr.bf16.gmra.mrb[0].mxu0 %v554
    %v660 = vpop.f32.mrb[0].mxu0
    %v661 = vadd.f32 %v576, %v660
    %v662 = vpop.f32.mrb[0].mxu0
    %v663 = vpop.f32.mrb[0].mxu0
    %v664 = vadd.f32 %v576, %v663
    %v665 = vpop.f32.mrb[0].mxu0
    %666 = vdwg.mxu0
    %v667 = vtanh.pop %v661
    %v668 = vtanh.pop %v664
    %v669 = vpack.c.bf16 %v668, %v667
    %v670 = vld [vmem:[#allocation7] sm:$0xf]
    %v671 = vld [vmem:[#allocation7 + $0x4] sm:$0xf]
    %v672 = vld [vmem:[#allocation7 + $0x8] sm:$0xf]
    %v673 = vld [vmem:[#allocation7 + $0xc] sm:$0xf]
    %v674 = vld [vmem:[#allocation7 + $0x10] sm:$0xf]
    %v675 = vld [vmem:[#allocation7 + $0x14] sm:$0xf]
    %v676 = vld [vmem:[#allocation7 + $0x18] sm:$0xf]
    %v677 = vld [vmem:[#allocation7 + $0x1c] sm:$0xf]
    %v678 = vld [vmem:[#allocation7 + $0x20] sm:$0xf]
    %v679 = vld [vmem:[#allocation7 + $0x24] sm:$0xf]
    %v680 = vld [vmem:[#allocation7 + $0x28] sm:$0xf]
    %v681 = vld [vmem:[#allocation7 + $0x2c] sm:$0xf]
    %v682 = vld [vmem:[#allocation7 + $0x30] sm:$0xf]
    %v683 = vld [vmem:[#allocation7 + $0x34] sm:$0xf]
    %v684 = vld [vmem:[#allocation7 + $0x38] sm:$0xf]
    %v685 = vld [vmem:[#allocation7 + $0x3c] sm:$0xf]
    %v686 = vld [vmem:[%s11] sm:$0x1]
    %v688 = vlaneseq
    %v689 = vshrl.u32 %v688, 7
    %v690 = vsub.s32 0, %v689
    %v691 = vrot.slane %v686, %v690
    %v709 = vunpack.c.l.b16 %v670
    %v710 = vunpack.c.l.b16 %v671
    %v711 = vunpack.c.l.b16 %v672
    %v712 = vunpack.c.l.b16 %v673
    %v713 = vunpack.c.l.b16 %v674
    %v714 = vunpack.c.l.b16 %v675
    %v715 = vunpack.c.l.b16 %v676
    %v716 = vunpack.c.l.b16 %v677
    %v717 = vunpack.c.l.b16 %v678
    %v718 = vunpack.c.l.b16 %v679
    %v719 = vunpack.c.l.b16 %v680
    %v720 = vunpack.c.l.b16 %v681
    %v721 = vunpack.c.l.b16 %v682
    %v722 = vunpack.c.l.b16 %v683
    %v723 = vunpack.c.l.b16 %v684
    %v724 = vunpack.c.l.b16 %v685
    %v725 = vpack.c.b16 %v710, %v709
    %v726 = vpack.c.b16 %v712, %v711
    %v727 = vpack.c.b16 %v714, %v713
    %v728 = vpack.c.b16 %v716, %v715
    %v729 = vpack.c.b16 %v718, %v717
    %v730 = vpack.c.b16 %v720, %v719
    %v731 = vpack.c.b16 %v722, %v721
    %v732 = vpack.c.b16 %v724, %v723
    %741 = vmatprep.subr.bf16.mxu0 0
    %742 = vmatpush1.bf16.msra.mxu0 %v725
    %743 = vmatprep.subr.bf16.mxu0 0
    %744 = vmatpush1.bf16.msra.mxu0 %v726
    %745 = vmatprep.subr.bf16.mxu0 0
    %746 = vmatpush1.bf16.msra.mxu0 %v727
    %747 = vmatprep.subr.bf16.mxu0 0
    %748 = vmatpush1.bf16.msra.mxu0 %v728
    %749 = vmatprep.subr.bf16.mxu0 0
    %750 = vmatpush1.bf16.msra.mxu0 %v729
    %751 = vmatprep.subr.bf16.mxu0 0
    %752 = vmatpush1.bf16.msra.mxu0 %v730
    %753 = vmatprep.subr.bf16.mxu0 0
    %754 = vmatpush1.bf16.msra.mxu0 %v731
    %755 = vmatprep.subr.bf16.mxu0 0
    %756 = vmatpush1.bf16.msra.mxu0 %v732
    %757 = vmatprep.subr.bf16.mxu0 0
    %758 = vmatpush1.bf16.msra.mxu0 0
    %759 = vmatprep.subr.bf16.mxu0 0
    %760 = vmatpush1.bf16.msra.mxu0 0
    %761 = vmatprep.subr.bf16.mxu0 0
    %762 = vmatpush1.bf16.msra.mxu0 0
    %763 = vmatprep.subr.bf16.mxu0 0
    %764 = vmatpush1.bf16.msra.mxu0 0
    %765 = vmatprep.subr.bf16.mxu0 0
    %766 = vmatpush1.bf16.msra.mxu0 0
    %767 = vmatprep.subr.bf16.mxu0 0
    %768 = vmatpush1.bf16.msra.mxu0 0
    %769 = vmatprep.subr.bf16.mxu0 0
    %770 = vmatpush1.bf16.msra.mxu0 0
    %771 = vmatprep.subr.bf16.mxu0 0
    %772 = vmatpush1.bf16.msra.mxu0 0
    %773 = vmatprep.mubr.bf16.mxu0 0
    %774 = vmatmul.mubr.bf16.gmra.mrb[0].mxu0 %v669
    %v775 = vpop.f32.mrb[0].mxu0
    %v776 = vadd.f32 %v691, %v775
    %v777 = vpop.f32.mrb[0].mxu0
    %v778 = vpop.f32.mrb[0].mxu0
    %v779 = vadd.f32 %v691, %v778
    %v780 = vpop.f32.mrb[0].mxu0
    %781 = vdwg.mxu0
    %v782 = vtanh.pop %v776
    %v783 = vtanh.pop %v779
    %v784 = vpack.c.bf16 %v783, %v782
    %v785 = vld [vmem:[#allocation9] sm:$0xf]
    %v786 = vld [vmem:[#allocation9 + $0x4] sm:$0xf]
    %v787 = vld [vmem:[#allocation9 + $0x8] sm:$0xf]
    %v788 = vld [vmem:[#allocation9 + $0xc] sm:$0xf]
    %v789 = vld [vmem:[#allocation9 + $0x10] sm:$0xf]
    %v790 = vld [vmem:[#allocation9 + $0x14] sm:$0xf]
    %v791 = vld [vmem:[#allocation9 + $0x18] sm:$0xf]
    %v792 = vld [vmem:[#allocation9 + $0x1c] sm:$0xf]
    %v793 = vld [vmem:[#allocation9 + $0x20] sm:$0xf]
    %v794 = vld [vmem:[#allocation9 + $0x24] sm:$0xf]
    %v795 = vld [vmem:[#allocation9 + $0x28] sm:$0xf]
    %v796 = vld [vmem:[#allocation9 + $0x2c] sm:$0xf]
    %v797 = vld [vmem:[#allocation9 + $0x30] sm:$0xf]
    %v798 = vld [vmem:[#allocation9 + $0x34] sm:$0xf]
    %v799 = vld [vmem:[#allocation9 + $0x38] sm:$0xf]
    %v800 = vld [vmem:[#allocation9 + $0x3c] sm:$0xf]
    %v801 = vld [vmem:[%s13] sm:$0x1]
    %v803 = vlaneseq
    %v804 = vshrl.u32 %v803, 7
    %v805 = vsub.s32 0, %v804
    %v806 = vrot.slane %v801, %v805
    %v824 = vunpack.c.l.b16 %v785
    %v825 = vunpack.c.l.b16 %v786
    %v826 = vunpack.c.l.b16 %v787
    %v827 = vunpack.c.l.b16 %v788
    %v828 = vunpack.c.l.b16 %v789
    %v829 = vunpack.c.l.b16 %v790
    %v830 = vunpack.c.l.b16 %v791
    %v831 = vunpack.c.l.b16 %v792
    %v832 = vunpack.c.l.b16 %v793
    %v833 = vunpack.c.l.b16 %v794
    %v834 = vunpack.c.l.b16 %v795
    %v835 = vunpack.c.l.b16 %v796
    %v836 = vunpack.c.l.b16 %v797
    %v837 = vunpack.c.l.b16 %v798
    %v838 = vunpack.c.l.b16 %v799
    %v839 = vunpack.c.l.b16 %v800
    %v840 = vpack.c.b16 %v825, %v824
    %v841 = vpack.c.b16 %v827, %v826
    %v842 = vpack.c.b16 %v829, %v828
    %v843 = vpack.c.b16 %v831, %v830
    %v844 = vpack.c.b16 %v833, %v832
    %v845 = vpack.c.b16 %v835, %v834
    %v846 = vpack.c.b16 %v837, %v836
    %v847 = vpack.c.b16 %v839, %v838
    %856 = vmatprep.subr.bf16.mxu0 0
    %857 = vmatpush1.bf16.msra.mxu0 %v840
    %858 = vmatprep.subr.bf16.mxu0 0
    %859 = vmatpush1.bf16.msra.mxu0 %v841
    %860 = vmatprep.subr.bf16.mxu0 0
    %861 = vmatpush1.bf16.msra.mxu0 %v842
    %862 = vmatprep.subr.bf16.mxu0 0
    %863 = vmatpush1.bf16.msra.mxu0 %v843
    %864 = vmatprep.subr.bf16.mxu0 0
    %865 = vmatpush1.bf16.msra.mxu0 %v844
    %866 = vmatprep.subr.bf16.mxu0 0
    %867 = vmatpush1.bf16.msra.mxu0 %v845
    %868 = vmatprep.subr.bf16.mxu0 0
    %869 = vmatpush1.bf16.msra.mxu0 %v846
    %870 = vmatprep.subr.bf16.mxu0 0
    %871 = vmatpush1.bf16.msra.mxu0 %v847
    %872 = vmatprep.subr.bf16.mxu0 0
    %873 = vmatpush1.bf16.msra.mxu0 0
    %874 = vmatprep.subr.bf16.mxu0 0
    %875 = vmatpush1.bf16.msra.mxu0 0
    %876 = vmatprep.subr.bf16.mxu0 0
    %877 = vmatpush1.bf16.msra.mxu0 0
    %878 = vmatprep.subr.bf16.mxu0 0
    %879 = vmatpush1.bf16.msra.mxu0 0
    %880 = vmatprep.subr.bf16.mxu0 0
    %881 = vmatpush1.bf16.msra.mxu0 0
    %882 = vmatprep.subr.bf16.mxu0 0
    %883 = vmatpush1.bf16.msra.mxu0 0
    %884 = vmatprep.subr.bf16.mxu0 0
    %885 = vmatpush1.bf16.msra.mxu0 0
    %886 = vmatprep.subr.bf16.mxu0 0
    %887 = vmatpush1.bf16.msra.mxu0 0
    %888 = vmatprep.mubr.bf16.mxu0 0
    %889 = vmatmul.mubr.bf16.gmra.mrb[0].mxu0 %v784
    %v890 = vpop.f32.mrb[0].mxu0
    %v891 = vadd.f32 %v806, %v890
    %v892 = vpop.f32.mrb[0].mxu0
    %v893 = vpop.f32.mrb[0].mxu0
    %v894 = vadd.f32 %v806, %v893
    %v895 = vpop.f32.mrb[0].mxu0
    %896 = vdwg.mxu0
    %v897 = vtanh.pop %v891
    %v898 = vtanh.pop %v894
    %v899 = vpack.c.bf16 %v898, %v897
    %v900 = vld [vmem:[#allocation10] sm:$0xf]
    %v901 = vld [vmem:[#allocation10 + $0x4] sm:$0xf]
    %v902 = vld [vmem:[#allocation10 + $0x8] sm:$0xf]
    %v903 = vld [vmem:[#allocation10 + $0xc] sm:$0xf]
    %v904 = vld [vmem:[#allocation10 + $0x10] sm:$0xf]
    %v905 = vld [vmem:[#allocation10 + $0x14] sm:$0xf]
    %v906 = vld [vmem:[#allocation10 + $0x18] sm:$0xf]
    %v907 = vld [vmem:[#allocation10 + $0x1c] sm:$0xf]
    %v908 = vld [vmem:[#allocation10 + $0x20] sm:$0xf]
    %v909 = vld [vmem:[#allocation10 + $0x24] sm:$0xf]
    %v910 = vld [vmem:[#allocation10 + $0x28] sm:$0xf]
    %v911 = vld [vmem:[#allocation10 + $0x2c] sm:$0xf]
    %v912 = vld [vmem:[#allocation10 + $0x30] sm:$0xf]
    %v913 = vld [vmem:[#allocation10 + $0x34] sm:$0xf]
    %v914 = vld [vmem:[#allocation10 + $0x38] sm:$0xf]
    %v915 = vld [vmem:[#allocation10 + $0x3c] sm:$0xf]
    %v916 = vld [vmem:[%s15] sm:$0x1]
    %v918 = vlaneseq
    %v919 = vshrl.u32 %v918, 7
    %v920 = vsub.s32 0, %v919
    %v921 = vrot.slane %v916, %v920
    %v939 = vunpack.c.l.b16 %v900
    %v940 = vunpack.c.l.b16 %v901
    %v941 = vunpack.c.l.b16 %v902
    %v942 = vunpack.c.l.b16 %v903
    %v943 = vunpack.c.l.b16 %v904
    %v944 = vunpack.c.l.b16 %v905
    %v945 = vunpack.c.l.b16 %v906
    %v946 = vunpack.c.l.b16 %v907
    %v947 = vunpack.c.l.b16 %v908
    %v948 = vunpack.c.l.b16 %v909
    %v949 = vunpack.c.l.b16 %v910
    %v950 = vunpack.c.l.b16 %v911
    %v951 = vunpack.c.l.b16 %v912
    %v952 = vunpack.c.l.b16 %v913
    %v953 = vunpack.c.l.b16 %v914
    %v954 = vunpack.c.l.b16 %v915
    %v955 = vpack.c.b16 %v940, %v939
    %v956 = vpack.c.b16 %v942, %v941
    %v957 = vpack.c.b16 %v944, %v943
    %v958 = vpack.c.b16 %v946, %v945
    %v959 = vpack.c.b16 %v948, %v947
    %v960 = vpack.c.b16 %v950, %v949
    %v961 = vpack.c.b16 %v952, %v951
    %v962 = vpack.c.b16 %v954, %v953
    %971 = vmatprep.subr.bf16.mxu0 0
    %972 = vmatpush1.bf16.msra.mxu0 %v955
    %973 = vmatprep.subr.bf16.mxu0 0
    %974 = vmatpush1.bf16.msra.mxu0 %v956
    %975 = vmatprep.subr.bf16.mxu0 0
    %976 = vmatpush1.bf16.msra.mxu0 %v957
    %977 = vmatprep.subr.bf16.mxu0 0
    %978 = vmatpush1.bf16.msra.mxu0 %v958
    %979 = vmatprep.subr.bf16.mxu0 0
    %980 = vmatpush1.bf16.msra.mxu0 %v959
    %981 = vmatprep.subr.bf16.mxu0 0
    %982 = vmatpush1.bf16.msra.mxu0 %v960
    %983 = vmatprep.subr.bf16.mxu0 0
    %984 = vmatpush1.bf16.msra.mxu0 %v961
    %985 = vmatprep.subr.bf16.mxu0 0
    %986 = vmatpush1.bf16.msra.mxu0 %v962
    %987 = vmatprep.subr.bf16.mxu0 0
    %988 = vmatpush1.bf16.msra.mxu0 0
    %989 = vmatprep.subr.bf16.mxu0 0
    %990 = vmatpush1.bf16.msra.mxu0 0
    %991 = vmatprep.subr.bf16.mxu0 0
    %992 = vmatpush1.bf16.msra.mxu0 0
    %993 = vmatprep.subr.bf16.mxu0 0
    %994 = vmatpush1.bf16.msra.mxu0 0
    %995 = vmatprep.subr.bf16.mxu0 0
    %996 = vmatpush1.bf16.msra.mxu0 0
    %997 = vmatprep.subr.bf16.mxu0 0
    %998 = vmatpush1.bf16.msra.mxu0 0
    %999 = vmatprep.subr.bf16.mxu0 0
    %1000 = vmatpush1.bf16.msra.mxu0 0
    %1001 = vmatprep.subr.bf16.mxu0 0
    %1002 = vmatpush1.bf16.msra.mxu0 0
    %1003 = vmatprep.mubr.bf16.mxu0 0
    %1004 = vmatmul.mubr.bf16.gmra.mrb[0].mxu0 %v899
    %v1005 = vpop.f32.mrb[0].mxu0
    %v1006 = vadd.f32 %v921, %v1005
    %v1007 = vpop.f32.mrb[0].mxu0
    %v1008 = vpop.f32.mrb[0].mxu0
    %v1009 = vadd.f32 %v921, %v1008
    %v1010 = vpop.f32.mrb[0].mxu0
    %1011 = vdwg.mxu0
    %v1012 = vtanh.pop %v1006
    %v1013 = vtanh.pop %v1009
    %v1014 = vadd.f32 %v1012, %v552
    %v1015 = vadd.f32 %v1013, %v553
    %v1016 = vpack.c.bf16 %v1015, %v1014
    %v1017 = vld [vmem:[#allocation12] sm:$0xf]
    %v1018 = vld [vmem:[#allocation12 + $0x4] sm:$0xf]
    %v1019 = vld [vmem:[#allocation12 + $0x8] sm:$0xf]
    %v1020 = vld [vmem:[#allocation12 + $0xc] sm:$0xf]
    %v1021 = vld [vmem:[#allocation12 + $0x10] sm:$0xf]
    %v1022 = vld [vmem:[#allocation12 + $0x14] sm:$0xf]
    %v1023 = vld [vmem:[#allocation12 + $0x18] sm:$0xf]
    %v1024 = vld [vmem:[#allocation12 + $0x1c] sm:$0xf]
    %v1025 = vld [vmem:[#allocation12 + $0x20] sm:$0xf]
    %v1026 = vld [vmem:[#allocation12 + $0x24] sm:$0xf]
    %v1027 = vld [vmem:[#allocation12 + $0x28] sm:$0xf]
    %v1028 = vld [vmem:[#allocation12 + $0x2c] sm:$0xf]
    %v1029 = vld [vmem:[#allocation12 + $0x30] sm:$0xf]
    %v1030 = vld [vmem:[#allocation12 + $0x34] sm:$0xf]
    %v1031 = vld [vmem:[#allocation12 + $0x38] sm:$0xf]
    %v1032 = vld [vmem:[#allocation12 + $0x3c] sm:$0xf]
    %v1033 = vld [vmem:[%s17] sm:$0x1]
    %v1035 = vlaneseq
    %v1036 = vshrl.u32 %v1035, 7
    %v1037 = vsub.s32 0, %v1036
    %v1038 = vrot.slane %v1033, %v1037
    %v1056 = vunpack.c.l.b16 %v1017
    %v1057 = vunpack.c.l.b16 %v1018
    %v1058 = vunpack.c.l.b16 %v1019
    %v1059 = vunpack.c.l.b16 %v1020
    %v1060 = vunpack.c.l.b16 %v1021
    %v1061 = vunpack.c.l.b16 %v1022
    %v1062 = vunpack.c.l.b16 %v1023
    %v1063 = vunpack.c.l.b16 %v1024
    %v1064 = vunpack.c.l.b16 %v1025
    %v1065 = vunpack.c.l.b16 %v1026
    %v1066 = vunpack.c.l.b16 %v1027
    %v1067 = vunpack.c.l.b16 %v1028
    %v1068 = vunpack.c.l.b16 %v1029
    %v1069 = vunpack.c.l.b16 %v1030
    %v1070 = vunpack.c.l.b16 %v1031
    %v1071 = vunpack.c.l.b16 %v1032
    %v1072 = vpack.c.b16 %v1057, %v1056
    %v1073 = vpack.c.b16 %v1059, %v1058
    %v1074 = vpack.c.b16 %v1061, %v1060
    %v1075 = vpack.c.b16 %v1063, %v1062
    %v1076 = vpack.c.b16 %v1065, %v1064
    %v1077 = vpack.c.b16 %v1067, %v1066
    %v1078 = vpack.c.b16 %v1069, %v1068
    %v1079 = vpack.c.b16 %v1071, %v1070
    %1088 = vmatprep.subr.bf16.mxu0 0
    %1089 = vmatpush1.bf16.msra.mxu0 %v1072
    %1090 = vmatprep.subr.bf16.mxu0 0
    %1091 = vmatpush1.bf16.msra.mxu0 %v1073
    %1092 = vmatprep.subr.bf16.mxu0 0
    %1093 = vmatpush1.bf16.msra.mxu0 %v1074
    %1094 = vmatprep.subr.bf16.mxu0 0
    %1095 = vmatpush1.bf16.msra.mxu0 %v1075
    %1096 = vmatprep.subr.bf16.mxu0 0
    %1097 = vmatpush1.bf16.msra.mxu0 %v1076
    %1098 = vmatprep.subr.bf16.mxu0 0
    %1099 = vmatpush1.bf16.msra.mxu0 %v1077
    %1100 = vmatprep.subr.bf16.mxu0 0
    %1101 = vmatpush1.bf16.msra.mxu0 %v1078
    %1102 = vmatprep.subr.bf16.mxu0 0
    %1103 = vmatpush1.bf16.msra.mxu0 %v1079
    %1104 = vmatprep.subr.bf16.mxu0 0
    %1105 = vmatpush1.bf16.msra.mxu0 0
    %1106 = vmatprep.subr.bf16.mxu0 0
    %1107 = vmatpush1.bf16.msra.mxu0 0
    %1108 = vmatprep.subr.bf16.mxu0 0
    %1109 = vmatpush1.bf16.msra.mxu0 0
    %1110 = vmatprep.subr.bf16.mxu0 0
    %1111 = vmatpush1.bf16.msra.mxu0 0
    %1112 = vmatprep.subr.bf16.mxu0 0
    %1113 = vmatpush1.bf16.msra.mxu0 0
    %1114 = vmatprep.subr.bf16.mxu0 0
    %1115 = vmatpush1.bf16.msra.mxu0 0
    %1116 = vmatprep.subr.bf16.mxu0 0
    %1117 = vmatpush1.bf16.msra.mxu0 0
    %1118 = vmatprep.subr.bf16.mxu0 0
    %1119 = vmatpush1.bf16.msra.mxu0 0
    %1120 = vmatprep.mubr.bf16.mxu0 0
    %1121 = vmatmul.mubr.bf16.gmra.mrb[0].mxu0 %v1016
    %v1122 = vpop.f32.mrb[0].mxu0
    %v1123 = vadd.f32 %v1038, %v1122
    %v1124 = vpop.f32.mrb[0].mxu0
    %v1125 = vpop.f32.mrb[0].mxu0
    %v1126 = vadd.f32 %v1038, %v1125
    %v1127 = vpop.f32.mrb[0].mxu0
    %1128 = vdwg.mxu0
    %1129 = vmax.xlane.f32.xlu0 %v1123
    %v1130 = vpop.xlane.xlu0 %1129
    %1131 = vmax.xlane.f32.xlu0 %v1126
    %v1132 = vpop.xlane.xlu0 %1131
    %v1133 = vsub.f32 %v1123, %v1130
    %v1134 = vsub.f32 %v1126, %v1132
    %v1135 = vmul.f32 %v1133, 1.442695
    %v1136 = vpow.pop %v1135
    %v1137 = vmul.f32 %v1134, 1.442695
    %v1138 = vpow.pop %v1137
    %1139 = vadd.xlane.f32.xlu0 %v1136
    %v1140 = vpop.xlane.xlu0 %1139
    %1141 = vadd.xlane.f32.xlu0 %v1138
    %v1142 = vpop.xlane.xlu0 %1141
    %v1143 = vrcp.pop %v1140
    %v1144 = vrcp.pop %v1142
    %v1145 = vmul.f32 %v1140, %v1143
    %v1146 = vmul.f32 %v1142, %v1144
    %v1147 = vsub.f32 2.0, %v1145
    %v1148 = vsub.f32 2.0, %v1146
    %v1149 = vmul.f32 %v1143, %v1147
    %v1150 = vmul.f32 %v1144, %v1148
    %v1151 = vmul.f32 %v1136, %v1149
    %v1152 = vmul.f32 %v1138, %v1150
    %1153 = vst [vmem:[%s19] sm:$0xff] %v1151
    %1154 = vst [vmem:[%s19 + $0x8] sm:$0xff] %v1152
    %1155 = vst [vmem:[%s18] sm:$0xff] %v534
    %1156 = vst [vmem:[%s18 + $0x8] sm:$0xff] %v536
    %1157 = vst [vmem:[%s18 + $0x20] sm:$0xff] %v538
    %1158 = vst [vmem:[%s18 + $0x28] sm:$0xff] %v540
    %1159 = vst [vmem:[%s18 + $0x10] sm:$0xff] %v552
    %1160 = vst [vmem:[%s18 + $0x30] sm:$0xff] %v553
    %1161 = vst [vmem:[%s18 + $0x18] sm:$0xff] %v1014
    %1162 = vst [vmem:[%s18 + $0x38] sm:$0xff] %v1015
    // Predicated region
    $region102: #{_gsm_forward_impl.1} parent=1 // pred_check
      _
    $region103: #{_gsm_forward_impl.1} parent=1 // pred_check_branch
      %1164 = sbr.rel (0) target = $region105
    $region104: #{_gsm_forward_impl.1} parent=1 // pred_region
      _
    $region105: #{_gsm_forward_impl.1} parent=1 // pred_fallthru
      _
    // Predicated region
    $region106: #{_gsm_forward_impl.1} parent=1 // pred_check
      _
    $region107: #{_gsm_forward_impl.1} parent=1 // pred_check_branch
      %1166 = sbr.rel (0) target = $region109
    $region108: #{_gsm_forward_impl.1} parent=1 // pred_region
      _
    $region109: #{_gsm_forward_impl.1} parent=1 // pred_fallthru
      _
    // Predicated region
    $region110: #{_gsm_forward_impl.1} parent=1 // pred_check
      _
    $region111: #{_gsm_forward_impl.1} parent=1 // pred_check_branch
      %1168 = sbr.rel (0) target = $region113
    $region112: #{_gsm_forward_impl.1} parent=1 // pred_region
      _
    $region113: #{_gsm_forward_impl.1} parent=1 // pred_fallthru
      _
    // Predicated region
    $region114: #{_gsm_forward_impl.1} parent=1 // pred_check
      _
    $region115: #{_gsm_forward_impl.1} parent=1 // pred_check_branch
      %1170 = sbr.rel (0) target = $region117
    $region116: #{_gsm_forward_impl.1} parent=1 // pred_region
      _
    $region117: #{_gsm_forward_impl.1} parent=1 // pred_fallthru
      _
    %1171 = vsyncpa [#allocation3], 1
    %1172 = vsyncpa [#allocation5], 1
    %1173 = vsyncpa [#allocation8], 1
    %1174 = vsyncpa [#allocation11], 1

// kernel: _gsm_forward_impl.1
$region0: #{_gsm_forward_impl.1}
  #allocation0 [shape = 'u32[]', space=smem, size = 0x4, offset = 0x4, fixed_abs, tag = 'smem constant byte address 0x4 - core index']
  #allocation1 [shape = 'u32[144,128]{1,0:T(1,128)}', space=vmem, size = 0x12000, scoped, tag = 'internal scratch']
  %s0 = inlined_call_operand.vmem [shape: bf16[16,64], index: 0, kind: input, shape index: {}]
  %s1 = inlined_call_operand.vmem [shape: f32[16,128], index: 1, kind: input, shape index: {}]
  %s2 = inlined_call_operand.vmem [shape: bf16[64,256], index: 2, kind: input, shape index: {}]
  %s3 = inlined_call_operand.vmem [shape: f32[1,256], index: 3, kind: input, shape index: {}]
  %s4 = inlined_call_operand.hbm [shape: bf16[128,128], index: 4, kind: input, shape index: {}]
  %s5 = inlined_call_operand.vmem [shape: f32[1,128], index: 5, kind: input, shape index: {}]
  %s6 = inlined_call_operand.hbm [shape: bf16[128,256], index: 6, kind: input, shape index: {}]
  %s7 = inlined_call_operand.vmem [shape: f32[1,256], index: 7, kind: input, shape index: {}]
  %s8 = inlined_call_operand.hbm [shape: bf16[128,128], index: 8, kind: input, shape index: {}]
  %s9 = inlined_call_operand.vmem [shape: f32[1,128], index: 9, kind: input, shape index: {}]
  %s10 = inlined_call_operand.hbm [shape: bf16[128,128], index: 10, kind: input, shape index: {}]
  %s11 = inlined_call_operand.vmem [shape: f32[1,128], index: 11, kind: input, shape index: {}]
  %s12 = inlined_call_operand.hbm [shape: bf16[128,128], index: 12, kind: input, shape index: {}]
  %s13 = inlined_call_operand.vmem [shape: f32[1,128], index: 13, kind: input, shape index: {}]
  %s14 = inlined_call_operand.hbm [shape: bf16[128,128], index: 14, kind: input, shape index: {}]
  %s15 = inlined_call_operand.vmem [shape: f32[1,128], index: 15, kind: input, shape index: {}]
  %s16 = inlined_call_operand.hbm [shape: bf16[128,128], index: 16, kind: input, shape index: {}]
  %s17 = inlined_call_operand.vmem [shape: f32[1,128], index: 17, kind: input, shape index: {}]
  %s18 = inlined_call_operand.vmem [shape: f32[16,512], index: 18, kind: output, shape index: {0}]
  %s19 = inlined_call_operand.vmem [shape: f32[16,128], index: 19, kind: output, shape index: {1}]
  %20 = xla_tuple %s18, %s19
  %s21 = sld [smem:[#allocation0]]
  $region118: #{_gsm_forward_impl.1} parent=0
    _
  %s23 = ssub.s32 1, %s21
  %s24 = scalar_select 0, %s23, %s21
  $region1: #{_gsm_forward_impl.1} parent=0
    #allocation2 [shape = 'u8[32768]{0}', space=vmem, size = 0x8000, scoped, tag = 'input window, operand 4, single buffered']
    #allocation3 [shape = 's32[1]{0}', space=sflag, size = 0x4, scoped, tag = 'scoped memory for _gsm_forward_impl.1']
    #allocation4 [shape = 'u8[65536]{0}', space=vmem, size = 0x10000, scoped, tag = 'input window, operand 6, single buffered']
    #allocation5 [shape = 's32[1]{0}', space=sflag, size = 0x4, scoped, tag = 'scoped memory for _gsm_forward_impl.1']
    #allocation6 [shape = 'u8[32768]{0}', space=vmem, size = 0x8000, scoped, tag = 'input window, operand 8, single buffered']
    #allocation7 [shape = 'u8[32768]{0}', space=vmem, size = 0x8000, scoped, tag = 'input window, operand 10, single buffered']
    #allocation8 [shape = 's32[1]{0}', space=sflag, size = 0x4, scoped, tag = 'scoped memory for _gsm_forward_impl.1']
    #allocation9 [shape = 'u8[32768]{0}', space=vmem, size = 0x8000, scoped, tag = 'input window, operand 12, single buffered']
    #allocation10 [shape = 'u8[32768]{0}', space=vmem, size = 0x8000, scoped, tag = 'input window, operand 14, single buffered']
    #allocation11 [shape = 's32[1]{0}', space=sflag, size = 0x4, scoped, tag = 'scoped memory for _gsm_forward_impl.1']
    #allocation12 [shape = 'u8[32768]{0}', space=vmem, size = 0x8000, scoped, tag = 'input window, operand 16, single buffered']
    %25 = vsyncpa [#allocation3], 0
    %26 = vsyncpa [#allocation5], 0
    %27 = vsyncpa [#allocation8], 0
    %28 = vsyncpa [#allocation11], 0
    // Predicated region
    $region2: #{_gsm_forward_impl.1} parent=1 // pred_check
      _
    $region3: #{_gsm_forward_impl.1} parent=1 // pred_check_branch
      %30 = sbr.rel (0) target = $region5
    $region4: #{_gsm_forward_impl.1} parent=1 // pred_region
      _
    $region5: #{_gsm_forward_impl.1} parent=1 // pred_fallthru
      _
    // Predicated region
    $region6: #{_gsm_forward_impl.1} parent=1 // pred_check
      _
    $region7: #{_gsm_forward_impl.1} parent=1 // pred_check_branch
      %32 = sbr.rel (0) target = $region9
    $region8: #{_gsm_forward_impl.1} parent=1 // pred_region
      _
    $region9: #{_gsm_forward_impl.1} parent=1 // pred_fallthru
      _
    // Predicated region
    $region10: #{_gsm_forward_impl.1} parent=1 // pred_check
      _
    $region11: #{_gsm_forward_impl.1} parent=1 // pred_check_branch
      %34 = sbr.rel (0) target = $region13
    $region12: #{_gsm_forward_impl.1} parent=1 // pred_region
      _
    $region13: #{_gsm_forward_impl.1} parent=1 // pred_fallthru
      _
    // Predicated region
    $region14: #{_gsm_forward_impl.1} parent=1 // pred_check
      _
    $region15: #{_gsm_forward_impl.1} parent=1 // pred_check_branch
      %36 = sbr.rel (0) target = $region17
    $region16: #{_gsm_forward_impl.1} parent=1 // pred_region
      _
    $region17: #{_gsm_forward_impl.1} parent=1 // pred_fallthru
      _
    // Predicated region
    $region18: #{_gsm_forward_impl.1} parent=1 // pred_check
      _
    $region19: #{_gsm_forward_impl.1} parent=1 // pred_check_branch
      %38 = sbr.rel (0) target = $region21
    $region20: #{_gsm_forward_impl.1} parent=1 // pred_region
      %s40 = ssub.s32 1024, 1024
      %41 = vsyncadd [#allocation3], %s40
      %s42 = sshll.u32 [#allocation2], 4
      %s43 = int_to_ptr.vmem [resolvable:$true] %s42
      %48 = dma.hbm_to_vmem [thread:$0]  %s4, 1024, %s43, [#allocation3], 64, 64, 4
    $region21: #{_gsm_forward_impl.1} parent=1 // pred_fallthru
      _
    // Predicated region
    $region22: #{_gsm_forward_impl.1} parent=1 // pred_check
      _
    $region23: #{_gsm_forward_impl.1} parent=1 // pred_check_branch
      %50 = sbr.rel (0) target = $region25
    $region24: #{_gsm_forward_impl.1} parent=1 // pred_region
      _
    $region25: #{_gsm_forward_impl.1} parent=1 // pred_fallthru
      _
    // Predicated region
    $region26: #{_gsm_forward_impl.1} parent=1 // pred_check
      _
    $region27: #{_gsm_forward_impl.1} parent=1 // pred_check_branch
      %52 = sbr.rel (0) target = $region29
    $region28: #{_gsm_forward_impl.1} parent=1 // pred_region
      %s54 = ssub.s32 2048, 2048
      %55 = vsyncadd [#allocation5], %s54
      %s56 = sshll.u32 [#allocation4], 4
      %s57 = int_to_ptr.vmem [resolvable:$true] %s56
      %62 = dma.hbm_to_vmem [thread:$0]  %s6, 2048, %s57, [#allocation5], 128, 128, 8
    $region29: #{_gsm_forward_impl.1} parent=1 // pred_fallthru
      _
    // Predicated region
    $region30: #{_gsm_forward_impl.1} parent=1 // pred_check
      _
    $region31: #{_gsm_forward_impl.1} parent=1 // pred_check_branch
      %64 = sbr.rel (0) target = $region33
    $region32: #{_gsm_forward_impl.1} parent=1 // pred_region
      _
    $region33: #{_gsm_forward_impl.1} parent=1 // pred_fallthru
      _
    // Predicated region
    $region34: #{_gsm_forward_impl.1} parent=1 // pred_check
      _
    $region35: #{_gsm_forward_impl.1} parent=1 // pred_check_branch
      %66 = sbr.rel (0) target = $region37
    $region36: #{_gsm_forward_impl.1} parent=1 // pred_region
      %s68 = ssub.s32 1024, 1024
      %69 = vsyncadd [#allocation5], %s68
      %s70 = sshll.u32 [#allocation6], 4
      %s71 = int_to_ptr.vmem [resolvable:$true] %s70
      %76 = dma.hbm_to_vmem [thread:$0]  %s8, 1024, %s71, [#allocation5], 64, 64, 4
    $region37: #{_gsm_forward_impl.1} parent=1 // pred_fallthru
      _
    // Predicated region
    $region38: #{_gsm_forward_impl.1} parent=1 // pred_check
      _
    $region39: #{_gsm_forward_impl.1} parent=1 // pred_check_branch
      %78 = sbr.rel (0) target = $region41
    $region40: #{_gsm_forward_impl.1} parent=1 // pred_region
      _
    $region41: #{_gsm_forward_impl.1} parent=1 // pred_fallthru
      _
    // Predicated region
    $region42: #{_gsm_forward_impl.1} parent=1 // pred_check
      _
    $region43: #{_gsm_forward_impl.1} parent=1 // pred_check_branch
      %80 = sbr.rel (0) target = $region45
    $region44: #{_gsm_forward_impl.1} parent=1 // pred_region
      %s82 = ssub.s32 1024, 1024
      %83 = vsyncadd [#allocation8], %s82
      %s84 = sshll.u32 [#allocation7], 4
      %s85 = int_to_ptr.vmem [resolvable:$true] %s84
      %90 = dma.hbm_to_vmem [thread:$0]  %s10, 1024, %s85, [#allocation8], 64, 64, 4
    $region45: #{_gsm_forward_impl.1} parent=1 // pred_fallthru
      _
    // Predicated region
    $region46: #{_gsm_forward_impl.1} parent=1 // pred_check
      _
    $region47: #{_gsm_forward_impl.1} parent=1 // pred_check_branch
      %92 = sbr.rel (0) target = $region49
    $region48: #{_gsm_forward_impl.1} parent=1 // pred_region
      _
    $region49: #{_gsm_forward_impl.1} parent=1 // pred_fallthru
      _
    // Predicated region
    $region50: #{_gsm_forward_impl.1} parent=1 // pred_check
      _
    $region51: #{_gsm_forward_impl.1} parent=1 // pred_check_branch
      %94 = sbr.rel (0) target = $region53
    $region52: #{_gsm_forward_impl.1} parent=1 // pred_region
      %s96 = ssub.s32 1024, 1024
      %97 = vsyncadd [#allocation8], %s96
      %s98 = sshll.u32 [#allocation9], 4
      %s99 = int_to_ptr.vmem [resolvable:$true] %s98
      %104 = dma.hbm_to_vmem [thread:$0]  %s12, 1024, %s99, [#allocation8], 64, 64, 4
    $region53: #{_gsm_forward_impl.1} parent=1 // pred_fallthru
      _
    // Predicated region
    $region54: #{_gsm_forward_impl.1} parent=1 // pred_check
      _
    $region55: #{_gsm_forward_impl.1} parent=1 // pred_check_branch
      %106 = sbr.rel (0) target = $region57
    $region56: #{_gsm_forward_impl.1} parent=1 // pred_region
      _
    $region57: #{_gsm_forward_impl.1} parent=1 // pred_fallthru
      _
    // Predicated region
    $region58: #{_gsm_forward_impl.1} parent=1 // pred_check
      _
    $region59: #{_gsm_forward_impl.1} parent=1 // pred_check_branch
      %108 = sbr.rel (0) target = $region61
    $region60: #{_gsm_forward_impl.1} parent=1 // pred_region
      %s110 = ssub.s32 1024, 1024
      %111 = vsyncadd [#allocation11], %s110
      %s112 = sshll.u32 [#allocation10], 4
      %s113 = int_to_ptr.vmem [resolvable:$true] %s112
      %118 = dma.hbm_to_vmem [thread:$0]  %s14, 1024, %s113, [#allocation11], 64, 64, 4
    $region61: #{_gsm_forward_impl.1} parent=1 // pred_fallthru
      _
    // Predicated region
    $region62: #{_gsm_forward_impl.1} parent=1 // pred_check
      _
    $region63: #{_gsm_forward_impl.1} parent=1 // pred_check_branch
      %120 = sbr.rel (0) target = $region65
    $region64: #{_gsm_forward_impl.1} parent=1 // pred_region
      _
    $region65: #{_gsm_forward_impl.1} parent=1 // pred_fallthru
      _
    // Predicated region
    $region66: #{_gsm_forward_impl.1} parent=1 // pred_check
      _
    $region67: #{_gsm_forward_impl.1} parent=1 // pred_check_branch
      %122 = sbr.rel (0) target = $region69
    $region68: #{_gsm_forward_impl.1} parent=1 // pred_region
      %s124 = ssub.s32 1024, 1024
      %125 = vsyncadd [#allocation11], %s124
      %s126 = sshll.u32 [#allocation12], 4
      %s127 = int_to_ptr.vmem [resolvable:$true] %s126
      %132 = dma.hbm_to_vmem [thread:$0]  %s16, 1024, %s127, [#allocation11], 64, 64, 4
    $region69: #{_gsm_forward_impl.1} parent=1 // pred_fallthru
      _
    // Predicated region
    $region70: #{_gsm_forward_impl.1} parent=1 // pred_check
      _
    $region71: #{_gsm_forward_impl.1} parent=1 // pred_check_branch
      %134 = sbr.rel (0) target = $region73
    $region72: #{_gsm_forward_impl.1} parent=1 // pred_region
      _
    $region73: #{_gsm_forward_impl.1} parent=1 // pred_fallthru
      _
    // Predicated region
    $region74: #{_gsm_forward_impl.1} parent=1 // pred_check
      _
    $region75: #{_gsm_forward_impl.1} parent=1 // pred_check_branch
      %136 = sbr.rel (0) target = $region77
    $region76: #{_gsm_forward_impl.1} parent=1 // pred_region
      %137 = dma.done [#allocation3], 1024
    $region77: #{_gsm_forward_impl.1} parent=1 // pred_fallthru
      _
    // Predicated region
    $region78: #{_gsm_forward_impl.1} parent=1 // pred_check
      _
    $region79: #{_gsm_forward_impl.1} parent=1 // pred_check_branch
      %139 = sbr.rel (0) target = $region81
    $region80: #{_gsm_forward_impl.1} parent=1 // pred_region
      %140 = dma.done [#allocation5], 2048
    $region81: #{_gsm_forward_impl.1} parent=1 // pred_fallthru
      _
    // Predicated region
    $region82: #{_gsm_forward_impl.1} parent=1 // pred_check
      _
    $region83: #{_gsm_forward_impl.1} parent=1 // pred_check_branch
      %142 = sbr.rel (0) target = $region85
    $region84: #{_gsm_forward_impl.1} parent=1 // pred_region
      %143 = dma.done [#allocation5], 1024
    $region85: #{_gsm_forward_impl.1} parent=1 // pred_fallthru
      _
    // Predicated region
    $region86: #{_gsm_forward_impl.1} parent=1 // pred_check
      _
    $region87: #{_gsm_forward_impl.1} parent=1 // pred_check_branch
      %145 = sbr.rel (0) target = $region89
    $region88: #{_gsm_forward_impl.1} parent=1 // pred_region
      %146 = dma.done [#allocation8], 1024
    $region89: #{_gsm_forward_impl.1} parent=1 // pred_fallthru
      _
    // Predicated region
    $region90: #{_gsm_forward_impl.1} parent=1 // pred_check
      _
    $region91: #{_gsm_forward_impl.1} parent=1 // pred_check_branch
      %148 = sbr.rel (0) target = $region93
    $region92: #{_gsm_forward_impl.1} parent=1 // pred_region
      %149 = dma.done [#allocation8], 1024
    $region93: #{_gsm_forward_impl.1} parent=1 // pred_fallthru
      _
    // Predicated region
    $region94: #{_gsm_forward_impl.1} parent=1 // pred_check
      _
    $region95: #{_gsm_forward_impl.1} parent=1 // pred_check_branch
      %151 = sbr.rel (0) target = $region97
    $region96: #{_gsm_forward_impl.1} parent=1 // pred_region
      %152 = dma.done [#allocation11], 1024
    $region97: #{_gsm_forward_impl.1} parent=1 // pred_fallthru
      _
    // Predicated region
    $region98: #{_gsm_forward_impl.1} parent=1 // pred_check
      _
    $region99: #{_gsm_forward_impl.1} parent=1 // pred_check_branch
      %154 = sbr.rel (0) target = $region101
    $region100: #{_gsm_forward_impl.1} parent=1 // pred_region
      %155 = dma.done [#allocation11], 1024
    $region101: #{_gsm_forward_impl.1} parent=1 // pred_fallthru
      _
    %v157 = vld [vmem:[%s0] sm:$0xf]
    %v158 = vld [vmem:[%s0 + $0x4] sm:$0xf]
    %v159 = vld [vmem:[%s2] sm:$0xff]
    %v160 = vld [vmem:[%s2 + $0x8] sm:$0xff]
    %v161 = vld [vmem:[%s2 + $0x10] sm:$0xff]
    %v162 = vld [vmem:[%s2 + $0x18] sm:$0xff]
    %v163 = vld [vmem:[%s2 + $0x20] sm:$0xff]
    %v164 = vld [vmem:[%s2 + $0x28] sm:$0xff]
    %v165 = vld [vmem:[%s2 + $0x30] sm:$0xff]
    %v166 = vld [vmem:[%s2 + $0x38] sm:$0xff]
    %v167 = vld [vmem:[%s3] sm:$0x3]
    %v169 = vlaneseq
    %v170 = vshrl.u32 %v169, 7
    %v171 = vsub.s32 0, %v170
    %v172 = vrot.slane %v167, %v171
    %v173 = vlaneseq
    %v174 = vshrl.u32 %v173, 7
    %v175 = vsub.s32 1, %v174
    %v176 = vrot.slane %v167, %v175
    %v181 = vunpack.c.l.b16 %v157
    %v182 = vunpack.c.l.b16 %v158
    %v183 = vpack.c.b16 %v182, %v181
    %v192 = vunpack.c.l.b16 %v159
    %v193 = vunpack.c.h.b16 %v159
    %v194 = vunpack.c.l.b16 %v160
    %v195 = vunpack.c.h.b16 %v160
    %v196 = vunpack.c.l.b16 %v161
    %v197 = vunpack.c.h.b16 %v161
    %v198 = vunpack.c.l.b16 %v162
    %v199 = vunpack.c.h.b16 %v162
    %v200 = vunpack.c.l.b16 %v163
    %v201 = vunpack.c.h.b16 %v163
    %v202 = vunpack.c.l.b16 %v164
    %v203 = vunpack.c.h.b16 %v164
    %v204 = vunpack.c.l.b16 %v165
    %v205 = vunpack.c.h.b16 %v165
    %v206 = vunpack.c.l.b16 %v166
    %v207 = vunpack.c.h.b16 %v166
    %v208 = vpack.c.b16 %v194, %v192
    %v209 = vpack.c.b16 %v195, %v193
    %v210 = vpack.c.b16 %v198, %v196
    %v211 = vpack.c.b16 %v199, %v197
    %v212 = vpack.c.b16 %v202, %v200
    %v213 = vpack.c.b16 %v203, %v201
    %v214 = vpack.c.b16 %v206, %v204
    %v215 = vpack.c.b16 %v207, %v205
    %vm224 = vcmask 523264
    %v226 = vsel %vm224, %v183, 0
    %228 = vmatprep.subr.bf16.mxu0 %v209
    %229 = vmatpush1.bf16.msra.mxu0 %v208
    %230 = vmatprep.subr.bf16.mxu0 %v211
    %231 = vmatpush1.bf16.msra.mxu0 %v210
    %232 = vmatprep.subr.bf16.mxu0 %v213
    %233 = vmatpush1.bf16.msra.mxu0 %v212
    %234 = vmatprep.subr.bf16.mxu0 %v215
    %235 = vmatpush1.bf16.msra.mxu0 %v214
    %236 = vmatprep.subr.bf16.mxu0 0
    %237 = vmatpush1.bf16.msra.mxu0 0
    %238 = vmatprep.subr.bf16.mxu0 0
    %239 = vmatpush1.bf16.msra.mxu0 0
    %240 = vmatprep.subr.bf16.mxu0 0
    %241 = vmatpush1.bf16.msra.mxu0 0
    %242 = vmatprep.subr.bf16.mxu0 0
    %243 = vmatpush1.bf16.msra.mxu0 0
    %244 = vmatprep.subr.bf16.mxu0 0
    %245 = vmatpush1.bf16.msra.mxu0 0
    %246 = vmatprep.subr.bf16.mxu0 0
    %247 = vmatpush1.bf16.msra.mxu0 0
    %248 = vmatprep.subr.bf16.mxu0 0
    %249 = vmatpush1.bf16.msra.mxu0 0
    %250 = vmatprep.subr.bf16.mxu0 0
    %251 = vmatpush1.bf16.msra.mxu0 0
    %252 = vmatprep.subr.bf16.mxu0 0
    %253 = vmatpush1.bf16.msra.mxu0 0
    %254 = vmatprep.subr.bf16.mxu0 0
    %255 = vmatpush1.bf16.msra.mxu0 0
    %256 = vmatprep.subr.bf16.mxu0 0
    %257 = vmatpush1.bf16.msra.mxu0 0
    %258 = vmatprep.subr.bf16.mxu0 0
    %259 = vmatpush1.bf16.msra.mxu0 0
    %260 = vmatprep.mubr.bf16.mxu0 0
    %261 = vmatmul.mubr.bf16.gmra.mrb[0].mxu0 %v226
    %v262 = vpop.f32.mrb[0].mxu0
    %v263 = vadd.f32 %v172, %v262
    %v264 = vpop.f32.mrb[0].mxu0
    %v265 = vadd.f32 %v176, %v264
    %v266 = vpop.f32.mrb[0].mxu0
    %v267 = vadd.f32 %v172, %v266
    %v268 = vpop.f32.mrb[0].mxu0
    %v269 = vadd.f32 %v176, %v268
    %270 = vdwg.mxu0
    %v271 = vmax.f32 %v263, 0.0
    %v272 = vmax.f32 %v267, 0.0
    %v273 = vpack.c.bf16 %v272, %v271
    %v274 = vld [vmem:[#allocation2] sm:$0xf]
    %v275 = vld [vmem:[#allocation2 + $0x4] sm:$0xf]
    %v276 = vld [vmem:[#allocation2 + $0x8] sm:$0xf]
    %v277 = vld [vmem:[#allocation2 + $0xc] sm:$0xf]
    %v278 = vld [vmem:[#allocation2 + $0x10] sm:$0xf]
    %v279 = vld [vmem:[#allocation2 + $0x14] sm:$0xf]
    %v280 = vld [vmem:[#allocation2 + $0x18] sm:$0xf]
    %v281 = vld [vmem:[#allocation2 + $0x1c] sm:$0xf]
    %v282 = vld [vmem:[#allocation2 + $0x20] sm:$0xf]
    %v283 = vld [vmem:[#allocation2 + $0x24] sm:$0xf]
    %v284 = vld [vmem:[#allocation2 + $0x28] sm:$0xf]
    %v285 = vld [vmem:[#allocation2 + $0x2c] sm:$0xf]
    %v286 = vld [vmem:[#allocation2 + $0x30] sm:$0xf]
    %v287 = vld [vmem:[#allocation2 + $0x34] sm:$0xf]
    %v288 = vld [vmem:[#allocation2 + $0x38] sm:$0xf]
    %v289 = vld [vmem:[#allocation2 + $0x3c] sm:$0xf]
    %v290 = vld [vmem:[%s5] sm:$0x1]
    %v292 = vlaneseq
    %v293 = vshrl.u32 %v292, 7
    %v294 = vsub.s32 0, %v293
    %v295 = vrot.slane %v290, %v294
    %v313 = vunpack.c.l.b16 %v274
    %v314 = vunpack.c.l.b16 %v275
    %v315 = vunpack.c.l.b16 %v276
    %v316 = vunpack.c.l.b16 %v277
    %v317 = vunpack.c.l.b16 %v278
    %v318 = vunpack.c.l.b16 %v279
    %v319 = vunpack.c.l.b16 %v280
    %v320 = vunpack.c.l.b16 %v281
    %v321 = vunpack.c.l.b16 %v282
    %v322 = vunpack.c.l.b16 %v283
    %v323 = vunpack.c.l.b16 %v284
    %v324 = vunpack.c.l.b16 %v285
    %v325 = vunpack.c.l.b16 %v286
    %v326 = vunpack.c.l.b16 %v287
    %v327 = vunpack.c.l.b16 %v288
    %v328 = vunpack.c.l.b16 %v289
    %v329 = vpack.c.b16 %v314, %v313
    %v330 = vpack.c.b16 %v316, %v315
    %v331 = vpack.c.b16 %v318, %v317
    %v332 = vpack.c.b16 %v320, %v319
    %v333 = vpack.c.b16 %v322, %v321
    %v334 = vpack.c.b16 %v324, %v323
    %v335 = vpack.c.b16 %v326, %v325
    %v336 = vpack.c.b16 %v328, %v327
    %345 = vmatprep.subr.bf16.mxu0 0
    %346 = vmatpush1.bf16.msra.mxu0 %v329
    %347 = vmatprep.subr.bf16.mxu0 0
    %348 = vmatpush1.bf16.msra.mxu0 %v330
    %349 = vmatprep.subr.bf16.mxu0 0
    %350 = vmatpush1.bf16.msra.mxu0 %v331
    %351 = vmatprep.subr.bf16.mxu0 0
    %352 = vmatpush1.bf16.msra.mxu0 %v332
    %353 = vmatprep.subr.bf16.mxu0 0
    %354 = vmatpush1.bf16.msra.mxu0 %v333
    %355 = vmatprep.subr.bf16.mxu0 0
    %356 = vmatpush1.bf16.msra.mxu0 %v334
    %357 = vmatprep.subr.bf16.mxu0 0
    %358 = vmatpush1.bf16.msra.mxu0 %v335
    %359 = vmatprep.subr.bf16.mxu0 0
    %360 = vmatpush1.bf16.msra.mxu0 %v336
    %361 = vmatprep.subr.bf16.mxu0 0
    %362 = vmatpush1.bf16.msra.mxu0 0
    %363 = vmatprep.subr.bf16.mxu0 0
    %364 = vmatpush1.bf16.msra.mxu0 0
    %365 = vmatprep.subr.bf16.mxu0 0
    %366 = vmatpush1.bf16.msra.mxu0 0
    %367 = vmatprep.subr.bf16.mxu0 0
    %368 = vmatpush1.bf16.msra.mxu0 0
    %369 = vmatprep.subr.bf16.mxu0 0
    %370 = vmatpush1.bf16.msra.mxu0 0
    %371 = vmatprep.subr.bf16.mxu0 0
    %372 = vmatpush1.bf16.msra.mxu0 0
    %373 = vmatprep.subr.bf16.mxu0 0
    %374 = vmatpush1.bf16.msra.mxu0 0
    %375 = vmatprep.subr.bf16.mxu0 0
    %376 = vmatpush1.bf16.msra.mxu0 0
    %377 = vmatprep.mubr.bf16.mxu0 0
    %378 = vmatmul.mubr.bf16.gmra.mrb[0].mxu0 %v273
    %v379 = vpop.f32.mrb[0].mxu0
    %v380 = vadd.f32 %v295, %v379
    %v381 = vpop.f32.mrb[0].mxu0
    %v382 = vpop.f32.mrb[0].mxu0
    %v383 = vadd.f32 %v295, %v382
    %v384 = vpop.f32.mrb[0].mxu0
    %385 = vdwg.mxu0
    %v386 = vmax.f32 %v380, 0.0
    %v387 = vmax.f32 %v383, 0.0
    %v388 = vadd.f32 %v386, %v265
    %v389 = vadd.f32 %v387, %v269
    %v390 = vpack.c.bf16 %v389, %v388
    %v391 = vld [vmem:[#allocation4] sm:$0xff]
    %v392 = vld [vmem:[#allocation4 + $0x8] sm:$0xff]
    %v393 = vld [vmem:[#allocation4 + $0x10] sm:$0xff]
    %v394 = vld [vmem:[#allocation4 + $0x18] sm:$0xff]
    %v395 = vld [vmem:[#allocation4 + $0x20] sm:$0xff]
    %v396 = vld [vmem:[#allocation4 + $0x28] sm:$0xff]
    %v397 = vld [vmem:[#allocation4 + $0x30] sm:$0xff]
    %v398 = vld [vmem:[#allocation4 + $0x38] sm:$0xff]
    %v399 = vld [vmem:[#allocation4 + $0x40] sm:$0xff]
    %v400 = vld [vmem:[#allocation4 + $0x48] sm:$0xff]
    %v401 = vld [vmem:[#allocation4 + $0x50] sm:$0xff]
    %v402 = vld [vmem:[#allocation4 + $0x58] sm:$0xff]
    %v403 = vld [vmem:[#allocation4 + $0x60] sm:$0xff]
    %v404 = vld [vmem:[#allocation4 + $0x68] sm:$0xff]
    %v405 = vld [vmem:[#allocation4 + $0x70] sm:$0xff]
    %v406 = vld [vmem:[#allocation4 + $0x78] sm:$0xff]
    %v407 = vld [vmem:[%s7] sm:$0x3]
    %v409 = vlaneseq
    %v410 = vshrl.u32 %v409, 7
    %v411 = vsub.s32 0, %v410
    %v412 = vrot.slane %v407, %v411
    %v413 = vlaneseq
    %v414 = vshrl.u32 %v413, 7
    %v415 = vsub.s32 1, %v414
    %v416 = vrot.slane %v407, %v415
    %v435 = vunpack.c.l.b16 %v391
    %v436 = vunpack.c.h.b16 %v391
    %v437 = vunpack.c.l.b16 %v392
    %v438 = vunpack.c.h.b16 %v392
    %v439 = vunpack.c.l.b16 %v393
    %v440 = vunpack.c.h.b16 %v393
    %v441 = vunpack.c.l.b16 %v394
    %v442 = vunpack.c.h.b16 %v394
    %v443 = vunpack.c.l.b16 %v395
    %v444 = vunpack.c.h.b16 %v395
    %v445 = vunpack.c.l.b16 %v396
    %v446 = vunpack.c.h.b16 %v396
    %v447 = vunpack.c.l.b16 %v397
    %v448 = vunpack.c.h.b16 %v397
    %v449 = vunpack.c.l.b16 %v398
    %v450 = vunpack.c.h.b16 %v398
    %v451 = vunpack.c.l.b16 %v399
    %v452 = vunpack.c.h.b16 %v399
    %v453 = vunpack.c.l.b16 %v400
    %v454 = vunpack.c.h.b16 %v400
    %v455 = vunpack.c.l.b16 %v401
    %v456 = vunpack.c.h.b16 %v401
    %v457 = vunpack.c.l.b16 %v402
    %v458 = vunpack.c.h.b16 %v402
    %v459 = vunpack.c.l.b16 %v403
    %v460 = vunpack.c.h.b16 %v403
    %v461 = vunpack.c.l.b16 %v404
    %v462 = vunpack.c.h.b16 %v404
    %v463 = vunpack.c.l.b16 %v405
    %v464 = vunpack.c.h.b16 %v405
    %v465 = vunpack.c.l.b16 %v406
    %v466 = vunpack.c.h.b16 %v406
    %v467 = vpack.c.b16 %v437, %v435
    %v468 = vpack.c.b16 %v438, %v436
    %v469 = vpack.c.b16 %v441, %v439
    %v470 = vpack.c.b16 %v442, %v440
    %v471 = vpack.c.b16 %v445, %v443
    %v472 = vpack.c.b16 %v446, %v444
    %v473 = vpack.c.b16 %v449, %v447
    %v474 = vpack.c.b16 %v450, %v448
    %v475 = vpack.c.b16 %v453, %v451
    %v476 = vpack.c.b16 %v454, %v452
    %v477 = vpack.c.b16 %v457, %v455
    %v478 = vpack.c.b16 %v458, %v456
    %v479 = vpack.c.b16 %v461, %v459
    %v480 = vpack.c.b16 %v462, %v460
    %v481 = vpack.c.b16 %v465, %v463
    %v482 = vpack.c.b16 %v466, %v464
    %499 = vmatprep.subr.bf16.mxu0 %v468
    %500 = vmatpush1.bf16.msra.mxu0 %v467
    %501 = vmatprep.subr.bf16.mxu0 %v470
    %502 = vmatpush1.bf16.msra.mxu0 %v469
    %503 = vmatprep.subr.bf16.mxu0 %v472
    %504 = vmatpush1.bf16.msra.mxu0 %v471
    %505 = vmatprep.subr.bf16.mxu0 %v474
    %506 = vmatpush1.bf16.msra.mxu0 %v473
    %507 = vmatprep.subr.bf16.mxu0 %v476
    %508 = vmatpush1.bf16.msra.mxu0 %v475
    %509 = vmatprep.subr.bf16.mxu0 %v478
    %510 = vmatpush1.bf16.msra.mxu0 %v477
    %511 = vmatprep.subr.bf16.mxu0 %v480
    %512 = vmatpush1.bf16.msra.mxu0 %v479
    %513 = vmatprep.subr.bf16.mxu0 %v482
    %514 = vmatpush1.bf16.msra.mxu0 %v481
    %515 = vmatprep.subr.bf16.mxu0 0
    %516 = vmatpush1.bf16.msra.mxu0 0
    %517 = vmatprep.subr.bf16.mxu0 0
    %518 = vmatpush1.bf16.msra.mxu0 0
    %519 = vmatprep.subr.bf16.mxu0 0
    %520 = vmatpush1.bf16.msra.mxu0 0
    %521 = vmatprep.subr.bf16.mxu0 0
    %522 = vmatpush1.bf16.msra.mxu0 0
    %523 = vmatprep.subr.bf16.mxu0 0
    %524 = vmatpush1.bf16.msra.mxu0 0
    %525 = vmatprep.subr.bf16.mxu0 0
    %526 = vmatpush1.bf16.msra.mxu0 0
    %527 = vmatprep.subr.bf16.mxu0 0
    %528 = vmatpush1.bf16.msra.mxu0 0
    %529 = vmatprep.subr.bf16.mxu0 0
    %530 = vmatpush1.bf16.msra.mxu0 0
    %531 = vmatprep.mubr.bf16.mxu0 0
    %532 = vmatmul.mubr.bf16.gmra.mrb[0].mxu0 %v390
    %v533 = vpop.f32.mrb[0].mxu0
    %v534 = vadd.f32 %v412, %v533
    %v535 = vpop.f32.mrb[0].mxu0
    %v536 = vadd.f32 %v416, %v535
    %v537 = vpop.f32.mrb[0].mxu0
    %v538 = vadd.f32 %v412, %v537
    %v539 = vpop.f32.mrb[0].mxu0
    %v540 = vadd.f32 %v416, %v539
    %541 = vdwg.mxu0
    %v542 = vmul.f32 %v536, 0.5
    %v543 = vmul.f32 %v540, 0.5
    %v544 = vmul.f32 %v542, 1.442695
    %v545 = vpow.pop %v544
    %v546 = vmul.f32 %v543, 1.442695
    %v547 = vpow.pop %v546
    %v548 = vld [vmem:[%s1] sm:$0xff]
    %v549 = vld [vmem:[%s1 + $0x8] sm:$0xff]
    %v550 = vmul.f32 %v548, %v545
    %v551 = vmul.f32 %v549, %v547
    %v552 = vadd.f32 %v550, %v534
    %v553 = vadd.f32 %v551, %v538
    %v554 = vpack.c.bf16 %v553, %v552
    %v555 = vld [vmem:[#allocation6] sm:$0xf]
    %v556 = vld [vmem:[#allocation6 + $0x4] sm:$0xf]
    %v557 = vld [vmem:[#allocation6 + $0x8] sm:$0xf]
    %v558 = vld [vmem:[#allocation6 + $0xc] sm:$0xf]
    %v559 = vld [vmem:[#allocation6 + $0x10] sm:$0xf]
    %v560 = vld [vmem:[#allocation6 + $0x14] sm:$0xf]
    %v561 = vld [vmem:[#allocation6 + $0x18] sm:$0xf]
    %v562 = vld [vmem:[#allocation6 + $0x1c] sm:$0xf]
    %v563 = vld [vmem:[#allocation6 + $0x20] sm:$0xf]
    %v564 = vld [vmem:[#allocation6 + $0x24] sm:$0xf]
    %v565 = vld [vmem:[#allocation6 + $0x28] sm:$0xf]
    %v566 = vld [vmem:[#allocation6 + $0x2c] sm:$0xf]
    %v567 = vld [vmem:[#allocation6 + $0x30] sm:$0xf]
    %v568 = vld [vmem:[#allocation6 + $0x34] sm:$0xf]
    %v569 = vld [vmem:[#allocation6 + $0x38] sm:$0xf]
    %v570 = vld [vmem:[#allocation6 + $0x3c] sm:$0xf]
    %v571 = vld [vmem:[%s9] sm:$0x1]
    %v573 = vlaneseq
    %v574 = vshrl.u32 %v573, 7
    %v575 = vsub.s32 0, %v574
    %v576 = vrot.slane %v571, %v575
    %v594 = vunpack.c.l.b16 %v555
    %v595 = vunpack.c.l.b16 %v556
    %v596 = vunpack.c.l.b16 %v557
    %v597 = vunpack.c.l.b16 %v558
    %v598 = vunpack.c.l.b16 %v559
    %v599 = vunpack.c.l.b16 %v560
    %v600 = vunpack.c.l.b16 %v561
    %v601 = vunpack.c.l.b16 %v562
    %v602 = vunpack.c.l.b16 %v563
    %v603 = vunpack.c.l.b16 %v564
    %v604 = vunpack.c.l.b16 %v565
    %v605 = vunpack.c.l.b16 %v566
    %v606 = vunpack.c.l.b16 %v567
    %v607 = vunpack.c.l.b16 %v568
    %v608 = vunpack.c.l.b16 %v569
    %v609 = vunpack.c.l.b16 %v570
    %v610 = vpack.c.b16 %v595, %v594
    %v611 = vpack.c.b16 %v597, %v596
    %v612 = vpack.c.b16 %v599, %v598
    %v613 = vpack.c.b16 %v601, %v600
    %v614 = vpack.c.b16 %v603, %v602
    %v615 = vpack.c.b16 %v605, %v604
    %v616 = vpack.c.b16 %v607, %v606
    %v617 = vpack.c.b16 %v609, %v608
    %626 = vmatprep.subr.bf16.mxu0 0
    %627 = vmatpush1.bf16.msra.mxu0 %v610
    %628 = vmatprep.subr.bf16.mxu0 0
    %629 = vmatpush1.bf16.msra.mxu0 %v611
    %630 = vmatprep.subr.bf16.mxu0 0
    %631 = vmatpush1.bf16.msra.mxu0 %v612
    %632 = vmatprep.subr.bf16.mxu0 0
    %633 = vmatpush1.bf16.msra.mxu0 %v613
    %634 = vmatprep.subr.bf16.mxu0 0
    %635 = vmatpush1.bf16.msra.mxu0 %v614
    %636 = vmatprep.subr.bf16.mxu0 0
    %637 = vmatpush1.bf16.msra.mxu0 %v615
    %638 = vmatprep.subr.bf16.mxu0 0
    %639 = vmatpush1.bf16.msra.mxu0 %v616
    %640 = vmatprep.subr.bf16.mxu0 0
    %641 = vmatpush1.bf16.msra.mxu0 %v617
    %642 = vmatprep.subr.bf16.mxu0 0
    %643 = vmatpush1.bf16.msra.mxu0 0
    %644 = vmatprep.subr.bf16.mxu0 0
    %645 = vmatpush1.bf16.msra.mxu0 0
    %646 = vmatprep.subr.bf16.mxu0 0
    %647 = vmatpush1.bf16.msra.mxu0 0
    %648 = vmatprep.subr.bf16.mxu0 0
    %649 = vmatpush1.bf16.msra.mxu0 0
    %650 = vmatprep.subr.bf16.mxu0 0
    %651 = vmatpush1.bf16.msra.mxu0 0
    %652 = vmatprep.subr.bf16.mxu0 0
    %653 = vmatpush1.bf16.msra.mxu0 0
    %654 = vmatprep.subr.bf16.mxu0 0
    %655 = vmatpush1.bf16.msra.mxu0 0
    %656 = vmatprep.subr.bf16.mxu0 0
    %657 = vmatpush1.bf16.msra.mxu0 0
    %658 = vmatprep.mubr.bf16.mxu0 0
    %659 = vmatmul.mubr.bf16.gmra.mrb[0].mxu0 %v554
    %v660 = vpop.f32.mrb[0].mxu0
    %v661 = vadd.f32 %v576, %v660
    %v662 = vpop.f32.mrb[0].mxu0
    %v663 = vpop.f32.mrb[0].mxu0
    %v664 = vadd.f32 %v576, %v663
    %v665 = vpop.f32.mrb[0].mxu0
    %666 = vdwg.mxu0
    %v667 = vtanh.pop %v661
    %v668 = vtanh.pop %v664
    %v669 = vpack.c.bf16 %v668, %v667
    %v670 = vld [vmem:[#allocation7] sm:$0xf]
    %v671 = vld [vmem:[#allocation7 + $0x4] sm:$0xf]
    %v672 = vld [vmem:[#allocation7 + $0x8] sm:$0xf]
    %v673 = vld [vmem:[#allocation7 + $0xc] sm:$0xf]
    %v674 = vld [vmem:[#allocation7 + $0x10] sm:$0xf]
    %v675 = vld [vmem:[#allocation7 + $0x14] sm:$0xf]
    %v676 = vld [vmem:[#allocation7 + $0x18] sm:$0xf]
    %v677 = vld [vmem:[#allocation7 + $0x1c] sm:$0xf]
    %v678 = vld [vmem:[#allocation7 + $0x20] sm:$0xf]
    %v679 = vld [vmem:[#allocation7 + $0x24] sm:$0xf]
    %v680 = vld [vmem:[#allocation7 + $0x28] sm:$0xf]
    %v681 = vld [vmem:[#allocation7 + $0x2c] sm:$0xf]
    %v682 = vld [vmem:[#allocation7 + $0x30] sm:$0xf]
    %v683 = vld [vmem:[#allocation7 + $0x34] sm:$0xf]
    %v684 = vld [vmem:[#allocation7 + $0x38] sm:$0xf]
    %v685 = vld [vmem:[#allocation7 + $0x3c] sm:$0xf]
    %v686 = vld [vmem:[%s11] sm:$0x1]
    %v688 = vlaneseq
    %v689 = vshrl.u32 %v688, 7
    %v690 = vsub.s32 0, %v689
    %v691 = vrot.slane %v686, %v690
    %v709 = vunpack.c.l.b16 %v670
    %v710 = vunpack.c.l.b16 %v671
    %v711 = vunpack.c.l.b16 %v672
    %v712 = vunpack.c.l.b16 %v673
    %v713 = vunpack.c.l.b16 %v674
    %v714 = vunpack.c.l.b16 %v675
    %v715 = vunpack.c.l.b16 %v676
    %v716 = vunpack.c.l.b16 %v677
    %v717 = vunpack.c.l.b16 %v678
    %v718 = vunpack.c.l.b16 %v679
    %v719 = vunpack.c.l.b16 %v680
    %v720 = vunpack.c.l.b16 %v681
    %v721 = vunpack.c.l.b16 %v682
    %v722 = vunpack.c.l.b16 %v683
    %v723 = vunpack.c.l.b16 %v684
    %v724 = vunpack.c.l.b16 %v685
    %v725 = vpack.c.b16 %v710, %v709
    %v726 = vpack.c.b16 %v712, %v711
    %v727 = vpack.c.b16 %v714, %v713
    %v728 = vpack.c.b16 %v716, %v715
    %v729 = vpack.c.b16 %v718, %v717
    %v730 = vpack.c.b16 %v720, %v719
    %v731 = vpack.c.b16 %v722, %v721
    %v732 = vpack.c.b16 %v724, %v723
    %741 = vmatprep.subr.bf16.mxu0 0
    %742 = vmatpush1.bf16.msra.mxu0 %v725
    %743 = vmatprep.subr.bf16.mxu0 0
    %744 = vmatpush1.bf16.msra.mxu0 %v726
    %745 = vmatprep.subr.bf16.mxu0 0
    %746 = vmatpush1.bf16.msra.mxu0 %v727
    %747 = vmatprep.subr.bf16.mxu0 0
    %748 = vmatpush1.bf16.msra.mxu0 %v728
    %749 = vmatprep.subr.bf16.mxu0 0
    %750 = vmatpush1.bf16.msra.mxu0 %v729
    %751 = vmatprep.subr.bf16.mxu0 0
    %752 = vmatpush1.bf16.msra.mxu0 %v730
    %753 = vmatprep.subr.bf16.mxu0 0
    %754 = vmatpush1.bf16.msra.mxu0 %v731
    %755 = vmatprep.subr.bf16.mxu0 0
    %756 = vmatpush1.bf16.msra.mxu0 %v732
    %757 = vmatprep.subr.bf16.mxu0 0
    %758 = vmatpush1.bf16.msra.mxu0 0
    %759 = vmatprep.subr.bf16.mxu0 0
    %760 = vmatpush1.bf16.msra.mxu0 0
    %761 = vmatprep.subr.bf16.mxu0 0
    %762 = vmatpush1.bf16.msra.mxu0 0
    %763 = vmatprep.subr.bf16.mxu0 0
    %764 = vmatpush1.bf16.msra.mxu0 0
    %765 = vmatprep.subr.bf16.mxu0 0
    %766 = vmatpush1.bf16.msra.mxu0 0
    %767 = vmatprep.subr.bf16.mxu0 0
    %768 = vmatpush1.bf16.msra.mxu0 0
    %769 = vmatprep.subr.bf16.mxu0 0
    %770 = vmatpush1.bf16.msra.mxu0 0
    %771 = vmatprep.subr.bf16.mxu0 0
    %772 = vmatpush1.bf16.msra.mxu0 0
    %773 = vmatprep.mubr.bf16.mxu0 0
    %774 = vmatmul.mubr.bf16.gmra.mrb[0].mxu0 %v669
    %v775 = vpop.f32.mrb[0].mxu0
    %v776 = vadd.f32 %v691, %v775
    %v777 = vpop.f32.mrb[0].mxu0
    %v778 = vpop.f32.mrb[0].mxu0
    %v779 = vadd.f32 %v691, %v778
    %v780 = vpop.f32.mrb[0].mxu0
    %781 = vdwg.mxu0
    %v782 = vtanh.pop %v776
    %v783 = vtanh.pop %v779
    %v784 = vpack.c.bf16 %v783, %v782
    %v785 = vld [vmem:[#allocation9] sm:$0xf]
    %v786 = vld [vmem:[#allocation9 + $0x4] sm:$0xf]
    %v787 = vld [vmem:[#allocation9 + $0x8] sm:$0xf]
    %v788 = vld [vmem:[#allocation9 + $0xc] sm:$0xf]
    %v789 = vld [vmem:[#allocation9 + $0x10] sm:$0xf]
    %v790 = vld [vmem:[#allocation9 + $0x14] sm:$0xf]
    %v791 = vld [vmem:[#allocation9 + $0x18] sm:$0xf]
    %v792 = vld [vmem:[#allocation9 + $0x1c] sm:$0xf]
    %v793 = vld [vmem:[#allocation9 + $0x20] sm:$0xf]
    %v794 = vld [vmem:[#allocation9 + $0x24] sm:$0xf]
    %v795 = vld [vmem:[#allocation9 + $0x28] sm:$0xf]
    %v796 = vld [vmem:[#allocation9 + $0x2c] sm:$0xf]
    %v797 = vld [vmem:[#allocation9 + $0x30] sm:$0xf]
    %v798 = vld [vmem:[#allocation9 + $0x34] sm:$0xf]
    %v799 = vld [vmem:[#allocation9 + $0x38] sm:$0xf]
    %v800 = vld [vmem:[#allocation9 + $0x3c] sm:$0xf]
    %v801 = vld [vmem:[%s13] sm:$0x1]
    %v803 = vlaneseq
    %v804 = vshrl.u32 %v803, 7
    %v805 = vsub.s32 0, %v804
    %v806 = vrot.slane %v801, %v805
    %v824 = vunpack.c.l.b16 %v785
    %v825 = vunpack.c.l.b16 %v786
    %v826 = vunpack.c.l.b16 %v787
    %v827 = vunpack.c.l.b16 %v788
    %v828 = vunpack.c.l.b16 %v789
    %v829 = vunpack.c.l.b16 %v790
    %v830 = vunpack.c.l.b16 %v791
    %v831 = vunpack.c.l.b16 %v792
    %v832 = vunpack.c.l.b16 %v793
    %v833 = vunpack.c.l.b16 %v794
    %v834 = vunpack.c.l.b16 %v795
    %v835 = vunpack.c.l.b16 %v796
    %v836 = vunpack.c.l.b16 %v797
    %v837 = vunpack.c.l.b16 %v798
    %v838 = vunpack.c.l.b16 %v799
    %v839 = vunpack.c.l.b16 %v800
    %v840 = vpack.c.b16 %v825, %v824
    %v841 = vpack.c.b16 %v827, %v826
    %v842 = vpack.c.b16 %v829, %v828
    %v843 = vpack.c.b16 %v831, %v830
    %v844 = vpack.c.b16 %v833, %v832
    %v845 = vpack.c.b16 %v835, %v834
    %v846 = vpack.c.b16 %v837, %v836
    %v847 = vpack.c.b16 %v839, %v838
    %856 = vmatprep.subr.bf16.mxu0 0
    %857 = vmatpush1.bf16.msra.mxu0 %v840
    %858 = vmatprep.subr.bf16.mxu0 0
    %859 = vmatpush1.bf16.msra.mxu0 %v841
    %860 = vmatprep.subr.bf16.mxu0 0
    %861 = vmatpush1.bf16.msra.mxu0 %v842
    %862 = vmatprep.subr.bf16.mxu0 0
    %863 = vmatpush1.bf16.msra.mxu0 %v843
    %864 = vmatprep.subr.bf16.mxu0 0
    %865 = vmatpush1.bf16.msra.mxu0 %v844
    %866 = vmatprep.subr.bf16.mxu0 0
    %867 = vmatpush1.bf16.msra.mxu0 %v845
    %868 = vmatprep.subr.bf16.mxu0 0
    %869 = vmatpush1.bf16.msra.mxu0 %v846
    %870 = vmatprep.subr.bf16.mxu0 0
    %871 = vmatpush1.bf16.msra.mxu0 %v847
    %872 = vmatprep.subr.bf16.mxu0 0
    %873 = vmatpush1.bf16.msra.mxu0 0
    %874 = vmatprep.subr.bf16.mxu0 0
    %875 = vmatpush1.bf16.msra.mxu0 0
    %876 = vmatprep.subr.bf16.mxu0 0
    %877 = vmatpush1.bf16.msra.mxu0 0
    %878 = vmatprep.subr.bf16.mxu0 0
    %879 = vmatpush1.bf16.msra.mxu0 0
    %880 = vmatprep.subr.bf16.mxu0 0
    %881 = vmatpush1.bf16.msra.mxu0 0
    %882 = vmatprep.subr.bf16.mxu0 0
    %883 = vmatpush1.bf16.msra.mxu0 0
    %884 = vmatprep.subr.bf16.mxu0 0
    %885 = vmatpush1.bf16.msra.mxu0 0
    %886 = vmatprep.subr.bf16.mxu0 0
    %887 = vmatpush1.bf16.msra.mxu0 0
    %888 = vmatprep.mubr.bf16.mxu0 0
    %889 = vmatmul.mubr.bf16.gmra.mrb[0].mxu0 %v784
    %v890 = vpop.f32.mrb[0].mxu0
    %v891 = vadd.f32 %v806, %v890
    %v892 = vpop.f32.mrb[0].mxu0
    %v893 = vpop.f32.mrb[0].mxu0
    %v894 = vadd.f32 %v806, %v893
    %v895 = vpop.f32.mrb[0].mxu0
    %896 = vdwg.mxu0
    %v897 = vtanh.pop %v891
    %v898 = vtanh.pop %v894
    %v899 = vpack.c.bf16 %v898, %v897
    %v900 = vld [vmem:[#allocation10] sm:$0xf]
    %v901 = vld [vmem:[#allocation10 + $0x4] sm:$0xf]
    %v902 = vld [vmem:[#allocation10 + $0x8] sm:$0xf]
    %v903 = vld [vmem:[#allocation10 + $0xc] sm:$0xf]
    %v904 = vld [vmem:[#allocation10 + $0x10] sm:$0xf]
    %v905 = vld [vmem:[#allocation10 + $0x14] sm:$0xf]
    %v906 = vld [vmem:[#allocation10 + $0x18] sm:$0xf]
    %v907 = vld [vmem:[#allocation10 + $0x1c] sm:$0xf]
    %v908 = vld [vmem:[#allocation10 + $0x20] sm:$0xf]
    %v909 = vld [vmem:[#allocation10 + $0x24] sm:$0xf]
    %v910 = vld [vmem:[#allocation10 + $0x28] sm:$0xf]
    %v911 = vld [vmem:[#allocation10 + $0x2c] sm:$0xf]
    %v912 = vld [vmem:[#allocation10 + $0x30] sm:$0xf]
    %v913 = vld [vmem:[#allocation10 + $0x34] sm:$0xf]
    %v914 = vld [vmem:[#allocation10 + $0x38] sm:$0xf]
    %v915 = vld [vmem:[#allocation10 + $0x3c] sm:$0xf]
    %v916 = vld [vmem:[%s15] sm:$0x1]
    %v918 = vlaneseq
    %v919 = vshrl.u32 %v918, 7
    %v920 = vsub.s32 0, %v919
    %v921 = vrot.slane %v916, %v920
    %v939 = vunpack.c.l.b16 %v900
    %v940 = vunpack.c.l.b16 %v901
    %v941 = vunpack.c.l.b16 %v902
    %v942 = vunpack.c.l.b16 %v903
    %v943 = vunpack.c.l.b16 %v904
    %v944 = vunpack.c.l.b16 %v905
    %v945 = vunpack.c.l.b16 %v906
    %v946 = vunpack.c.l.b16 %v907
    %v947 = vunpack.c.l.b16 %v908
    %v948 = vunpack.c.l.b16 %v909
    %v949 = vunpack.c.l.b16 %v910
    %v950 = vunpack.c.l.b16 %v911
    %v951 = vunpack.c.l.b16 %v912
    %v952 = vunpack.c.l.b16 %v913
    %v953 = vunpack.c.l.b16 %v914
    %v954 = vunpack.c.l.b16 %v915
    %v955 = vpack.c.b16 %v940, %v939
    %v956 = vpack.c.b16 %v942, %v941
    %v957 = vpack.c.b16 %v944, %v943
    %v958 = vpack.c.b16 %v946, %v945
    %v959 = vpack.c.b16 %v948, %v947
    %v960 = vpack.c.b16 %v950, %v949
    %v961 = vpack.c.b16 %v952, %v951
    %v962 = vpack.c.b16 %v954, %v953
    %971 = vmatprep.subr.bf16.mxu0 0
    %972 = vmatpush1.bf16.msra.mxu0 %v955
    %973 = vmatprep.subr.bf16.mxu0 0
    %974 = vmatpush1.bf16.msra.mxu0 %v956
    %975 = vmatprep.subr.bf16.mxu0 0
    %976 = vmatpush1.bf16.msra.mxu0 %v957
    %977 = vmatprep.subr.bf16.mxu0 0
    %978 = vmatpush1.bf16.msra.mxu0 %v958
    %979 = vmatprep.subr.bf16.mxu0 0
    %980 = vmatpush1.bf16.msra.mxu0 %v959
    %981 = vmatprep.subr.bf16.mxu0 0
    %982 = vmatpush1.bf16.msra.mxu0 %v960
    %983 = vmatprep.subr.bf16.mxu0 0
    %984 = vmatpush1.bf16.msra.mxu0 %v961
    %985 = vmatprep.subr.bf16.mxu0 0
    %986 = vmatpush1.bf16.msra.mxu0 %v962
    %987 = vmatprep.subr.bf16.mxu0 0
    %988 = vmatpush1.bf16.msra.mxu0 0
    %989 = vmatprep.subr.bf16.mxu0 0
    %990 = vmatpush1.bf16.msra.mxu0 0
    %991 = vmatprep.subr.bf16.mxu0 0
    %992 = vmatpush1.bf16.msra.mxu0 0
    %993 = vmatprep.subr.bf16.mxu0 0
    %994 = vmatpush1.bf16.msra.mxu0 0
    %995 = vmatprep.subr.bf16.mxu0 0
    %996 = vmatpush1.bf16.msra.mxu0 0
    %997 = vmatprep.subr.bf16.mxu0 0
    %998 = vmatpush1.bf16.msra.mxu0 0
    %999 = vmatprep.subr.bf16.mxu0 0
    %1000 = vmatpush1.bf16.msra.mxu0 0
    %1001 = vmatprep.subr.bf16.mxu0 0
    %1002 = vmatpush1.bf16.msra.mxu0 0
    %1003 = vmatprep.mubr.bf16.mxu0 0
    %1004 = vmatmul.mubr.bf16.gmra.mrb[0].mxu0 %v899
    %v1005 = vpop.f32.mrb[0].mxu0
    %v1006 = vadd.f32 %v921, %v1005
    %v1007 = vpop.f32.mrb[0].mxu0
    %v1008 = vpop.f32.mrb[0].mxu0
    %v1009 = vadd.f32 %v921, %v1008
    %v1010 = vpop.f32.mrb[0].mxu0
    %1011 = vdwg.mxu0
    %v1012 = vtanh.pop %v1006
    %v1013 = vtanh.pop %v1009
    %v1014 = vadd.f32 %v1012, %v552
    %v1015 = vadd.f32 %v1013, %v553
    %v1016 = vpack.c.bf16 %v1015, %v1014
    %v1017 = vld [vmem:[#allocation12] sm:$0xf]
    %v1018 = vld [vmem:[#allocation12 + $0x4] sm:$0xf]
    %v1019 = vld [vmem:[#allocation12 + $0x8] sm:$0xf]
    %v1020 = vld [vmem:[#allocation12 + $0xc] sm:$0xf]
    %v1021 = vld [vmem:[#allocation12 + $0x10] sm:$0xf]
    %v1022 = vld [vmem:[#allocation12 + $0x14] sm:$0xf]
    %v1023 = vld [vmem:[#allocation12 + $0x18] sm:$0xf]
    %v1024 = vld [vmem:[#allocation12 + $0x1c] sm:$0xf]
    %v1025 = vld [vmem:[#allocation12 + $0x20] sm:$0xf]
    %v1026 = vld [vmem:[#allocation12 + $0x24] sm:$0xf]
    %v1027 = vld [vmem:[#allocation12 + $0x28] sm:$0xf]
    %v1028 = vld [vmem:[#allocation12 + $0x2c] sm:$0xf]
    %v1029 = vld [vmem:[#allocation12 + $0x30] sm:$0xf]
    %v1030 = vld [vmem:[#allocation12 + $0x34] sm:$0xf]
    %v1031 = vld [vmem:[#allocation12 + $0x38] sm:$0xf]
    %v1032 = vld [vmem:[#allocation12 + $0x3c] sm:$0xf]
    %v1033 = vld [vmem:[%s17] sm:$0x1]
    %v1035 = vlaneseq
    %v1036 = vshrl.u32 %v1035, 7
    %v1037 = vsub.s32 0, %v1036
    %v1038 = vrot.slane %v1033, %v1037
    %v1056 = vunpack.c.l.b16 %v1017
    %v1057 = vunpack.c.l.b16 %v1018
    %v1058 = vunpack.c.l.b16 %v1019
    %v1059 = vunpack.c.l.b16 %v1020
    %v1060 = vunpack.c.l.b16 %v1021
    %v1061 = vunpack.c.l.b16 %v1022
    %v1062 = vunpack.c.l.b16 %v1023
    %v1063 = vunpack.c.l.b16 %v1024
    %v1064 = vunpack.c.l.b16 %v1025
    %v1065 = vunpack.c.l.b16 %v1026
    %v1066 = vunpack.c.l.b16 %v1027
    %v1067 = vunpack.c.l.b16 %v1028
    %v1068 = vunpack.c.l.b16 %v1029
    %v1069 = vunpack.c.l.b16 %v1030
    %v1070 = vunpack.c.l.b16 %v1031
    %v1071 = vunpack.c.l.b16 %v1032
    %v1072 = vpack.c.b16 %v1057, %v1056
    %v1073 = vpack.c.b16 %v1059, %v1058
    %v1074 = vpack.c.b16 %v1061, %v1060
    %v1075 = vpack.c.b16 %v1063, %v1062
    %v1076 = vpack.c.b16 %v1065, %v1064
    %v1077 = vpack.c.b16 %v1067, %v1066
    %v1078 = vpack.c.b16 %v1069, %v1068
    %v1079 = vpack.c.b16 %v1071, %v1070
    %1088 = vmatprep.subr.bf16.mxu0 0
    %1089 = vmatpush1.bf16.msra.mxu0 %v1072
    %1090 = vmatprep.subr.bf16.mxu0 0
    %1091 = vmatpush1.bf16.msra.mxu0 %v1073
    %1092 = vmatprep.subr.bf16.mxu0 0
    %1093 = vmatpush1.bf16.msra.mxu0 %v1074
    %1094 = vmatprep.subr.bf16.mxu0 0
    %1095 = vmatpush1.bf16.msra.mxu0 %v1075
    %1096 = vmatprep.subr.bf16.mxu0 0
    %1097 = vmatpush1.bf16.msra.mxu0 %v1076
    %1098 = vmatprep.subr.bf16.mxu0 0
    %1099 = vmatpush1.bf16.msra.mxu0 %v1077
    %1100 = vmatprep.subr.bf16.mxu0 0
    %1101 = vmatpush1.bf16.msra.mxu0 %v1078
    %1102 = vmatprep.subr.bf16.mxu0 0
    %1103 = vmatpush1.bf16.msra.mxu0 %v1079
    %1104 = vmatprep.subr.bf16.mxu0 0
    %1105 = vmatpush1.bf16.msra.mxu0 0
    %1106 = vmatprep.subr.bf16.mxu0 0
    %1107 = vmatpush1.bf16.msra.mxu0 0
    %1108 = vmatprep.subr.bf16.mxu0 0
    %1109 = vmatpush1.bf16.msra.mxu0 0
    %1110 = vmatprep.subr.bf16.mxu0 0
    %1111 = vmatpush1.bf16.msra.mxu0 0
    %1112 = vmatprep.subr.bf16.mxu0 0
    %1113 = vmatpush1.bf16.msra.mxu0 0
    %1114 = vmatprep.subr.bf16.mxu0 0
    %1115 = vmatpush1.bf16.msra.mxu0 0
    %1116 = vmatprep.subr.bf16.mxu0 0
    %1117 = vmatpush1.bf16.msra.mxu0 0
    %1118 = vmatprep.subr.bf16.mxu0 0
    %1119 = vmatpush1.bf16.msra.mxu0 0
    %1120 = vmatprep.mubr.bf16.mxu0 0
    %1121 = vmatmul.mubr.bf16.gmra.mrb[0].mxu0 %v1016
    %v1122 = vpop.f32.mrb[0].mxu0
    %v1123 = vadd.f32 %v1038, %v1122
    %v1124 = vpop.f32.mrb[0].mxu0
    %v1125 = vpop.f32.mrb[0].mxu0
    %v1126 = vadd.f32 %v1038, %v1125
    %v1127 = vpop.f32.mrb[0].mxu0
    %1128 = vdwg.mxu0
    %1129 = vmax.xlane.f32.xlu0 %v1123
    %v1130 = vpop.xlane.xlu0 %1129
    %1131 = vmax.xlane.f32.xlu0 %v1126
    %v1132 = vpop.xlane.xlu0 %1131
    %v1133 = vsub.f32 %v1123, %v1130
    %v1134 = vsub.f32 %v1126, %v1132
    %v1135 = vmul.f32 %v1133, 1.442695
    %v1136 = vpow.pop %v1135
    %v1137 = vmul.f32 %v1134, 1.442695
    %v1138 = vpow.pop %v1137
    %1139 = vadd.xlane.f32.xlu0 %v1136
    %v1140 = vpop.xlane.xlu0 %1139
    %1141 = vadd.xlane.f32.xlu0 %v1138
    %v1142 = vpop.xlane.xlu0 %1141
    %v1143 = vrcp.pop %v1140
    %v1144 = vrcp.pop %v1142
    %v1145 = vmul.f32 %v1140, %v1143
    %v1146 = vmul.f32 %v1142, %v1144
    %v1147 = vsub.f32 2.0, %v1145
    %v1148 = vsub.f32 2.0, %v1146
    %v1149 = vmul.f32 %v1143, %v1147
    %v1150 = vmul.f32 %v1144, %v1148
    %v1151 = vmul.f32 %v1136, %v1149
    %v1152 = vmul.f32 %v1138, %v1150
    %1153 = vst [vmem:[%s19] sm:$0xff] %v1151
    %1154 = vst [vmem:[%s19 + $0x8] sm:$0xff] %v1152
    %1155 = vst [vmem:[%s18] sm:$0xff] %v534
    %1156 = vst [vmem:[%s18 + $0x8] sm:$0xff] %v536
    %1157 = vst [vmem:[%s18 + $0x20] sm:$0xff] %v538
    %1158 = vst [vmem:[%s18 + $0x28] sm:$0xff] %v540
    %1159 = vst [vmem:[%s18 + $0x10] sm:$0xff] %v552
    %1160 = vst [vmem:[%s18 + $0x30] sm:$0xff] %v553
    %1161 = vst [vmem:[%s18 + $0x18] sm:$0xff] %v1014
    %1162 = vst [vmem:[%s18 + $0x38] sm:$0xff] %v1015
    // Predicated region
    $region102: #{_gsm_forward_impl.1} parent=1 // pred_check
      _
    $region103: #{_gsm_forward_impl.1} parent=1 // pred_check_branch
      %1164 = sbr.rel (0) target = $region105
    $region104: #{_gsm_forward_impl.1} parent=1 // pred_region
      _
    $region105: #{_gsm_forward_impl.1} parent=1 // pred_fallthru
      _
    // Predicated region
    $region106: #{_gsm_forward_impl.1} parent=1 // pred_check
      _
    $region107: #{_gsm_forward_impl.1} parent=1 // pred_check_branch
      %1166 = sbr.rel (0) target = $region109
    $region108: #{_gsm_forward_impl.1} parent=1 // pred_region
      _
    $region109: #{_gsm_forward_impl.1} parent=1 // pred_fallthru
      _
    // Predicated region
    $region110: #{_gsm_forward_impl.1} parent=1 // pred_check
      _
    $region111: #{_gsm_forward_impl.1} parent=1 // pred_check_branch
      %1168 = sbr.rel (0) target = $region113
    $region112: #{_gsm_forward_impl.1} parent=1 // pred_region
      _
    $region113: #{_gsm_forward_impl.1} parent=1 // pred_fallthru
      _
    // Predicated region
    $region114: #{_gsm_forward_impl.1} parent=1 // pred_check
      _
    $region115: #{_gsm_forward_impl.1} parent=1 // pred_check_branch
      %1170 = sbr.rel (0) target = $region117
    $region116: #{_gsm_forward_impl.1} parent=1 // pred_region
      _
    $region117: #{_gsm_forward_impl.1} parent=1 // pred_fallthru
      _
    %1171 = vsyncpa [#allocation3], 1
    %1172 = vsyncpa [#allocation5], 1
    %1173 = vsyncpa [#allocation8], 1
    %1174 = vsyncpa [#allocation11], 1

</llo_original>
